<compile_context>
chip_gen: v7x
topology: tpu7x:2x2x1
jax: 0.10.0
libtpu: 0.0.40
codegen_flags: <defaults>
</compile_context>

<pallas_src>
import math
import jax
import jax.numpy as jnp
from jax.experimental import pallas as pl
from jax.experimental.pallas import tpu as pltpu

# ---------------- model dimensions (small, synthetic) ----------------
VOCAB = 100
VOCAB_PAD = 128  # padded embedding-table rows (one-hot lane width)
B = 2            # batch
S = 8            # sequence length
H = 32           # hidden size
NUM_HEADS = 4
HEAD_DIM = H // NUM_HEADS
FFN = 64         # intermediate size
HEAD_OUT = 64    # txt_head output dim
NUM_CLASSES = 3
OUT_PAD = 128    # lane-dense padded logits width
NTOK = B * S                 # 16 token rows
BHS = B * NUM_HEADS * S      # 64 block-diagonal K/V rows
NEG_INF = -1e9
LN_EPS = 1e-12   # NOTE: HF-BERT style LayerNorm eps (PyTorch nn.LayerNorm default is 1e-5)

# ---- packed-slab row offsets (all multiples of 8 -> sublane-aligned slices) ----
# w32 slab (width 32)
W32_TOK = 0                      # tok_emb_pad  rows [0, 128)
W32_POS = VOCAB_PAD              # pos_tiled    rows [128, 144)
W32_HM = W32_POS + NTOK          # head_mask    rows [144, 208)
W32_WO = W32_HM + BHS            # wo           rows [208, 240)
W32_W2 = W32_WO + H              # w2           rows [240, 304)
W32_ROWS = W32_W2 + FFN          # 304
# w64 slab (width 64)
W64_SEG = 0                      # seg_mat      rows [0, 64)
W64_W1 = BHS                     # w1           rows [64, 96)
W64_WH = W64_W1 + H              # wh           rows [96, 128)
# w128 slab (width 128)
ROW_LN0G, ROW_LN0B = 0, 1
ROW_LN1G, ROW_LN1B = 2, 3
ROW_LN2G, ROW_LN2B = 4, 5
ROW_BQKV, ROW_BO, ROW_BFF1, ROW_BFF2, ROW_BH, ROW_BC = 6, 7, 8, 9, 10, 11
W128_WC = 16                     # wc_pad       rows [16, 80)


# ---------------- single fused Pallas kernel ----------------
def fused_model_kernel(
    ids_ref,     # (NTOK, 1)    int32  token ids (per-call)
    smask_ref,   # (NTOK, BHS)  f32    combined additive mask: batch-block + padding (per-call)
    repl_ref,    # (BHS, NTOK)  f32    row-replication matrix (constant)
    w32_ref,     # (304, 32)    f32    [tok_emb_pad; pos_tiled; head_mask; wo; w2]
    w64_ref,     # (128, 64)    f32    [seg_mat; w1; wh]
    wqkv_ref,    # (32, 96)     f32    fused QKV weight (Q columns pre-scaled by 1/sqrt(HD))
    w128_ref,    # (80, 128)    f32    [LN params + biases (16 rows); wc_pad (64 rows)]
    out_ref,     # (NTOK, 128)  f32    padded logits for every token row
):
    f32 = jnp.float32

    def ln_row(i):
        return w128_ref[i:i + 1, 0:H]

    def layer_norm(x, g, b):
        mu = jnp.mean(x, axis=-1, keepdims=True)
        var = jnp.mean((x - mu) ** 2, axis=-1, keepdims=True)
        return (x - mu) * jax.lax.rsqrt(var + LN_EPS) * g + b

    # ---- embedding lookup (one-hot matmul) + positional add ----
    ids = ids_ref[...]                                                  # (NTOK, 1) int32
    cols = jax.lax.broadcasted_iota(jnp.int32, (NTOK, VOCAB_PAD), 1)
    onehot = (cols == ids).astype(f32)                                  # (NTOK, 128)
    x = jnp.dot(onehot, w32_ref[W32_TOK:W32_TOK + VOCAB_PAD, :],
                preferred_element_type=f32)                             # (NTOK, H)
    x = x + w32_ref[W32_POS:W32_POS + NTOK, :]

    # ---- embedding LayerNorm ----
    h0 = layer_norm(x, ln_row(ROW_LN0G), ln_row(ROW_LN0B))

    # ---- fused QKV projection (attention scale folded into Q weights) ----
    qkv = jnp.dot(h0, wqkv_ref[...], preferred_element_type=f32) \
        + w128_ref[ROW_BQKV:ROW_BQKV + 1, 0:3 * H]                      # (NTOK, 3H)
    q = qkv[:, 0:H]
    k = qkv[:, H:2 * H]
    v = qkv[:, 2 * H:3 * H]

    # ---- block-diagonal multi-head attention, whole batch in one pass ----
    head_mask = w32_ref[W32_HM:W32_HM + BHS, :]                         # (BHS, H)
    repl = repl_ref[...]                                                # (BHS, NTOK)
    k_big = jnp.dot(repl, k, preferred_element_type=f32) * head_mask    # (BHS, H)
    v_big = jnp.dot(repl, v, preferred_element_type=f32) * head_mask    # (BHS, H)

    # scores[i, b*NH*S + h*S + j] = q_h[i] . k_h[b*S + j]
    scores = jax.lax.dot_general(q, k_big, (((1,), (1,)), ((), ())),
                                 preferred_element_type=f32)            # (NTOK, BHS)
    scores = scores + smask_ref[...]                                    # batch-block + padding mask
    scores = scores - jnp.max(scores, axis=-1, keepdims=True)           # shared row shift;
    p = jnp.exp(scores)                                                 # cancelled by per-segment renorm
    seg_sum = jnp.dot(p, w64_ref[W64_SEG:W64_SEG + BHS, :],
                      preferred_element_type=f32)                       # per-(batch,head) sums
    p = p / (seg_sum + 1e-30)                                           # eps: empty cross-batch segments -> 0
    ctx = jnp.dot(p, v_big, preferred_element_type=f32)                 # (NTOK, H), heads concatenated

    # ---- attention output projection + residual + LN ----
    attn = jnp.dot(ctx, w32_ref[W32_WO:W32_WO + H, :], preferred_element_type=f32) \
        + w128_ref[ROW_BO:ROW_BO + 1, 0:H]
    h1 = layer_norm(h0 + attn, ln_row(ROW_LN1G), ln_row(ROW_LN1B))

    # ---- feed-forward + residual + LN ----
    f = jnp.dot(h1, w64_ref[W64_W1:W64_W1 + H, :], preferred_element_type=f32) \
        + w128_ref[ROW_BFF1:ROW_BFF1 + 1, 0:FFN]
    # TODO(synk): PyTorch nn.GELU defaults to exact erf; tanh approximation used here.
    f = jax.nn.gelu(f, approximate=True)
    f = jnp.dot(f, w32_ref[W32_W2:W32_W2 + FFN, :], preferred_element_type=f32) \
        + w128_ref[ROW_BFF2:ROW_BFF2 + 1, 0:H]
    h2 = layer_norm(h1 + f, ln_row(ROW_LN2G), ln_row(ROW_LN2B))         # (NTOK, H)

    # ---- txt_head + txt_classifier on ALL rows (MXU-free); CLS rows picked by wrapper ----
    hh = jnp.dot(h2, w64_ref[W64_WH:W64_WH + H, :], preferred_element_type=f32) \
        + w128_ref[ROW_BH:ROW_BH + 1, 0:HEAD_OUT]
    hh = jnp.maximum(hh, 0.0)                                           # ReLU (txt_head)
    out_ref[...] = (
        jnp.dot(hh, w128_ref[W128_WC:W128_WC + HEAD_OUT, :], preferred_element_type=f32)
        + w128_ref[ROW_BC:ROW_BC + 1, :]
    ).astype(out_ref.dtype)


# ---------------- wrapper ----------------
def text_only_model_forward(input_ids, attention_mask, p):
    ids = input_ids.reshape(NTOK, 1).astype(jnp.int32)
    # per-call combined additive score mask (padding part) on top of the constant batch-block mask
    neg = (1.0 - attention_mask.astype(jnp.float32)) * NEG_INF          # (B, S)
    pad_row = jnp.tile(neg, (1, NUM_HEADS)).reshape(1, BHS)             # (1, BHS)
    smask = p["block_mask"] + pad_row                                   # (NTOK, BHS)

    vmem = pl.BlockSpec(memory_space=pltpu.MemorySpace.VMEM)
    logits_pad = pl.pallas_call(
        fused_model_kernel,
        out_shape=jax.ShapeDtypeStruct((NTOK, OUT_PAD), jnp.float32),
        in_specs=[vmem] * 7,
        out_specs=vmem,
    )(ids, smask, p["repl"], p["w32"], p["w64"], p["w_qkv"], p["w128"])
    # CLS rows (row b*S of every batch), valid classes
    return logits_pad[::S, :NUM_CLASSES]                                # (B, NUM_CLASSES)


# ---------------- deterministic parameter init (packs all constants once) ----------------
def init_params(key):
    keys = jax.random.split(key, 10)
    n = lambda k, shape, s=0.02: jax.random.normal(k, shape, jnp.float32) * s

    tok_emb = n(keys[0], (VOCAB, H))
    pos_emb = n(keys[1], (S, H))
    wq, wk, wv = n(keys[2], (H, H)), n(keys[3], (H, H)), n(keys[4], (H, H))
    wo = n(keys[5], (H, H))
    w1 = n(keys[6], (H, FFN))
    w2 = n(keys[7], (FFN, H))
    wh = n(keys[8], (H, HEAD_OUT))
    wc = n(keys[9], (HEAD_OUT, NUM_CLASSES))

    bq = bk = bv = jnp.zeros((H,), jnp.float32)
    bo = jnp.zeros((H,), jnp.float32)
    bff1 = jnp.zeros((FFN,), jnp.float32)
    bff2 = jnp.zeros((H,), jnp.float32)
    bh = jnp.zeros((HEAD_OUT,), jnp.float32)
    bc = jnp.zeros((NUM_CLASSES,), jnp.float32)
    ln_g = jnp.ones((H,), jnp.float32)
    ln_b = jnp.zeros((H,), jnp.float32)

    scale = 1.0 / math.sqrt(HEAD_DIM)

    # ---- attention structure constants (no per-call cost, no in-kernel iota chains) ----
    r = jnp.arange(BHS)
    head_of_r = (r // S) % NUM_HEADS
    src_of_r = (r // (NUM_HEADS * S)) * S + (r % S)
    head_mask = (head_of_r[:, None] == (jnp.arange(H) // HEAD_DIM)[None, :]).astype(jnp.float32)
    repl = (src_of_r[:, None] == jnp.arange(NTOK)[None, :]).astype(jnp.float32)      # (BHS, NTOK)
    seg_mat = ((r // S)[:, None] == (r // S)[None, :]).astype(jnp.float32)            # (BHS, BHS)
    block_mask = jnp.where(
        (jnp.arange(NTOK) // S)[:, None] == (r // (NUM_HEADS * S))[None, :],
        0.0, NEG_INF).astype(jnp.float32)                                             # (NTOK, BHS)

    # ---- packed constant slabs ----
    tok_emb_pad = jnp.pad(tok_emb, ((0, VOCAB_PAD - VOCAB), (0, 0)))                  # (128, 32)
    pos_tiled = jnp.tile(pos_emb, (B, 1))                                             # (NTOK, 32)
    w32 = jnp.concatenate([tok_emb_pad, pos_tiled, head_mask, wo, w2], axis=0)        # (304, 32)
    w64 = jnp.concatenate([seg_mat, w1, wh], axis=0)                                  # (128, 64)
    w_qkv = jnp.concatenate([wq * scale, wk, wv], axis=1)                             # (32, 96)

    def row128(v):
        v = v.reshape(1, -1)
        return jnp.pad(v, ((0, 0), (0, OUT_PAD - v.shape[1])))

    prows = jnp.concatenate([
        row128(ln_g), row128(ln_b),                            # embedding LN
        row128(ln_g), row128(ln_b),                            # post-attention LN
        row128(ln_g), row128(ln_b),                            # post-FFN LN
        row128(jnp.concatenate([bq * scale, bk, bv])),         # fused QKV bias (Q part pre-scaled)
        row128(bo), row128(bff1), row128(bff2), row128(bh), row128(bc),
        jnp.zeros((4, OUT_PAD), jnp.float32),                  # pad to 16 rows
    ], axis=0)                                                                          # (16, 128)
    wc_pad = jnp.pad(wc, ((0, 0), (0, OUT_PAD - NUM_CLASSES)))                          # (64, 128)
    w128 = jnp.concatenate([prows, wc_pad], axis=0)                                     # (80, 128)

    return {"w32": w32, "w64": w64, "w_qkv": w_qkv, "w128": w128,
            "repl": repl, "block_mask": block_mask}


if __name__ == "__main__":
    key = jax.random.PRNGKey(0)
    k_ids, k_param = jax.random.split(key)

    input_ids = jax.random.randint(k_ids, (B, S), 0, VOCAB, dtype=jnp.int32)
    attention_mask = jnp.ones((B, S), jnp.int32).at[1, S - 2:].set(0)  # pad tail of 2nd seq

    params = init_params(k_param)

    logits = jax.jit(lambda ids, m: text_only_model_forward(ids, m, params))(
        input_ids, attention_mask
    )
    jax.block_until_ready(logits)
    assert logits.shape == (B, NUM_CLASSES) and logits.dtype == jnp.float32
    assert bool(jnp.all(jnp.isfinite(logits)))
    print("KERNEL_OK")
</pallas_src>

<mosaic_0001>
module attributes {stable_mosaic.version = 11 : i64} {
  func.func @fused_model_kernel(%arg0: memref<16x1xi32, #tpu.memory_space<vmem>>, %arg1: memref<16x64xf32, #tpu.memory_space<vmem>>, %arg2: memref<64x16xf32, #tpu.memory_space<vmem>>, %arg3: memref<304x32xf32, #tpu.memory_space<vmem>>, %arg4: memref<128x64xf32, #tpu.memory_space<vmem>>, %arg5: memref<32x96xf32, #tpu.memory_space<vmem>>, %arg6: memref<80x128xf32, #tpu.memory_space<vmem>>, %arg7: memref<16x128xf32, #tpu.memory_space<vmem>>) attributes {dimension_semantics = [], scalar_prefetch = 0 : i64, scratch_operands = 0 : i64, tpu.core_type = #tpu.core_type<tc>} {
    %c0 = arith.constant 0 : index
    %c0_0 = arith.constant 0 : index
    %0 = vector.load %arg0[%c0, %c0_0] : memref<16x1xi32, #tpu.memory_space<vmem>>, vector<16x1xi32>
    %1 = tpu.iota {dimensions = array<i32: 1>} : vector<16x128xi32>
    %2 = vector.broadcast %0 : vector<16x1xi32> to vector<16x128xi32>
    %3 = arith.cmpi eq, %1, %2 : vector<16x128xi32>
    %4 = arith.extui %3 : vector<16x128xi1> to vector<16x128xi32>
    %5 = arith.sitofp %4 : vector<16x128xi32> to vector<16x128xf32>
    %c0_1 = arith.constant 0 : index
    %c0_2 = arith.constant 0 : index
    %6 = vector.load %arg3[%c0_1, %c0_2] : memref<304x32xf32, #tpu.memory_space<vmem>>, vector<128x32xf32>
    %cst = arith.constant dense<0.000000e+00> : vector<16x32xf32>
    %7 = tpu.matmul %5, %6, %cst {dimension_numbers = #tpu.dot_dimension_numbers<[1], [0], [0], [1], [0, 0, 1, 1], [], []>} : vector<16x128xf32>, vector<128x32xf32>, vector<16x32xf32> -> vector<16x32xf32>
    %c128 = arith.constant 128 : index
    %c0_3 = arith.constant 0 : index
    %8 = vector.load %arg3[%c128, %c0_3] : memref<304x32xf32, #tpu.memory_space<vmem>>, vector<16x32xf32>
    %9 = arith.addf %7, %8 : vector<16x32xf32>
    %c0_4 = arith.constant 0 : index
    %c0_5 = arith.constant 0 : index
    %10 = vector.load %arg6[%c0_4, %c0_5] : memref<80x128xf32, #tpu.memory_space<vmem>>, vector<1x32xf32>
    %c1 = arith.constant 1 : index
    %c0_6 = arith.constant 0 : index
    %11 = vector.load %arg6[%c1, %c0_6] : memref<80x128xf32, #tpu.memory_space<vmem>>, vector<1x32xf32>
    %cst_7 = arith.constant dense<0.000000e+00> : vector<16xf32>
    %12 = vector.multi_reduction <add>, %9, %cst_7 [1] : vector<16x32xf32> to vector<16xf32>
    %13 = vector.shape_cast %12 : vector<16xf32> to vector<16x1xf32>
    %cst_8 = arith.constant 3.200000e+01 : f32
    %14 = vector.broadcast %cst_8 : f32 to vector<16x1xf32>
    %15 = arith.divf %13, %14 : vector<16x1xf32>
    %16 = vector.broadcast %15 : vector<16x1xf32> to vector<16x32xf32>
    %17 = arith.subf %9, %16 : vector<16x32xf32>
    %18 = arith.mulf %17, %17 : vector<16x32xf32>
    %cst_9 = arith.constant dense<0.000000e+00> : vector<16xf32>
    %19 = vector.multi_reduction <add>, %18, %cst_9 [1] : vector<16x32xf32> to vector<16xf32>
    %20 = vector.shape_cast %19 : vector<16xf32> to vector<16x1xf32>
    %cst_10 = arith.constant 3.200000e+01 : f32
    %21 = vector.broadcast %cst_10 : f32 to vector<16x1xf32>
    %22 = arith.divf %20, %21 : vector<16x1xf32>
    %23 = vector.broadcast %15 : vector<16x1xf32> to vector<16x32xf32>
    %24 = arith.subf %9, %23 : vector<16x32xf32>
    %cst_11 = arith.constant 9.99999996E-13 : f32
    %25 = vector.broadcast %cst_11 : f32 to vector<16x1xf32>
    %26 = arith.addf %22, %25 : vector<16x1xf32>
    %27 = math.rsqrt %26 : vector<16x1xf32>
    %28 = vector.broadcast %27 : vector<16x1xf32> to vector<16x32xf32>
    %29 = arith.mulf %24, %28 : vector<16x32xf32>
    %30 = vector.broadcast %10 : vector<1x32xf32> to vector<16x32xf32>
    %31 = arith.mulf %29, %30 : vector<16x32xf32>
    %32 = vector.broadcast %11 : vector<1x32xf32> to vector<16x32xf32>
    %33 = arith.addf %31, %32 : vector<16x32xf32>
    %c0_12 = arith.constant 0 : index
    %c0_13 = arith.constant 0 : index
    %34 = vector.load %arg5[%c0_12, %c0_13] : memref<32x96xf32, #tpu.memory_space<vmem>>, vector<32x96xf32>
    %cst_14 = arith.constant dense<0.000000e+00> : vector<16x96xf32>
    %35 = tpu.matmul %33, %34, %cst_14 {dimension_numbers = #tpu.dot_dimension_numbers<[1], [0], [0], [1], [0, 0, 1, 1], [], []>} : vector<16x32xf32>, vector<32x96xf32>, vector<16x96xf32> -> vector<16x96xf32>
    %c6 = arith.constant 6 : index
    %c0_15 = arith.constant 0 : index
    %36 = vector.load %arg6[%c6, %c0_15] : memref<80x128xf32, #tpu.memory_space<vmem>>, vector<1x96xf32>
    %37 = vector.broadcast %36 : vector<1x96xf32> to vector<16x96xf32>
    %38 = arith.addf %35, %37 : vector<16x96xf32>
    %39 = vector.extract_strided_slice %38 {offsets = [0, 0], sizes = [16, 32], strides = [1, 1]} : vector<16x96xf32> to vector<16x32xf32>
    %40 = vector.extract_strided_slice %38 {offsets = [0, 32], sizes = [16, 32], strides = [1, 1]} : vector<16x96xf32> to vector<16x32xf32>
    %41 = vector.extract_strided_slice %38 {offsets = [0, 64], sizes = [16, 32], strides = [1, 1]} : vector<16x96xf32> to vector<16x32xf32>
    %c144 = arith.constant 144 : index
    %c0_16 = arith.constant 0 : index
    %42 = vector.load %arg3[%c144, %c0_16] : memref<304x32xf32, #tpu.memory_space<vmem>>, vector<64x32xf32>
    %c0_17 = arith.constant 0 : index
    %c0_18 = arith.constant 0 : index
    %43 = vector.load %arg2[%c0_17, %c0_18] : memref<64x16xf32, #tpu.memory_space<vmem>>, vector<64x16xf32>
    %cst_19 = arith.constant dense<0.000000e+00> : vector<64x32xf32>
    %44 = tpu.matmul %43, %40, %cst_19 {dimension_numbers = #tpu.dot_dimension_numbers<[1], [0], [0], [1], [0, 0, 1, 1], [], []>} : vector<64x16xf32>, vector<16x32xf32>, vector<64x32xf32> -> vector<64x32xf32>
    %45 = arith.mulf %44, %42 : vector<64x32xf32>
    %cst_20 = arith.constant dense<0.000000e+00> : vector<64x32xf32>
    %46 = tpu.matmul %43, %41, %cst_20 {dimension_numbers = #tpu.dot_dimension_numbers<[1], [0], [0], [1], [0, 0, 1, 1], [], []>} : vector<64x16xf32>, vector<16x32xf32>, vector<64x32xf32> -> vector<64x32xf32>
    %47 = arith.mulf %46, %42 : vector<64x32xf32>
    %cst_21 = arith.constant dense<0.000000e+00> : vector<16x64xf32>
    %48 = tpu.matmul %39, %45, %cst_21 {dimension_numbers = #tpu.dot_dimension_numbers<[1], [1], [0], [0], [0, 0, 1, 0], [], []>} : vector<16x32xf32>, vector<64x32xf32>, vector<16x64xf32> -> vector<16x64xf32>
    %c0_22 = arith.constant 0 : index
    %c0_23 = arith.constant 0 : index
    %49 = vector.load %arg1[%c0_22, %c0_23] : memref<16x64xf32, #tpu.memory_space<vmem>>, vector<16x64xf32>
    %50 = arith.addf %48, %49 : vector<16x64xf32>
    %cst_24 = arith.constant dense<0xFF800000> : vector<16xf32>
    %51 = vector.multi_reduction <maximumf>, %50, %cst_24 [1] : vector<16x64xf32> to vector<16xf32>
    %52 = vector.shape_cast %51 : vector<16xf32> to vector<16x1xf32>
    %53 = vector.broadcast %52 : vector<16x1xf32> to vector<16x64xf32>
    %54 = arith.subf %50, %53 : vector<16x64xf32>
    %55 = math.exp %54 : vector<16x64xf32>
    %c0_25 = arith.constant 0 : index
    %c0_26 = arith.constant 0 : index
    %56 = vector.load %arg4[%c0_25, %c0_26] : memref<128x64xf32, #tpu.memory_space<vmem>>, vector<64x64xf32>
    %cst_27 = arith.constant dense<0.000000e+00> : vector<16x64xf32>
    %57 = tpu.matmul %55, %56, %cst_27 {dimension_numbers = #tpu.dot_dimension_numbers<[1], [0], [0], [1], [0, 0, 1, 1], [], []>} : vector<16x64xf32>, vector<64x64xf32>, vector<16x64xf32> -> vector<16x64xf32>
    %cst_28 = arith.constant 1.000000e-30 : f32
    %58 = vector.broadcast %cst_28 : f32 to vector<16x64xf32>
    %59 = arith.addf %57, %58 : vector<16x64xf32>
    %60 = arith.divf %55, %59 : vector<16x64xf32>
    %cst_29 = arith.constant dense<0.000000e+00> : vector<16x32xf32>
    %61 = tpu.matmul %60, %47, %cst_29 {dimension_numbers = #tpu.dot_dimension_numbers<[1], [0], [0], [1], [0, 0, 1, 1], [], []>} : vector<16x64xf32>, vector<64x32xf32>, vector<16x32xf32> -> vector<16x32xf32>
    %c208 = arith.constant 208 : index
    %c0_30 = arith.constant 0 : index
    %62 = vector.load %arg3[%c208, %c0_30] : memref<304x32xf32, #tpu.memory_space<vmem>>, vector<32x32xf32>
    %cst_31 = arith.constant dense<0.000000e+00> : vector<16x32xf32>
    %63 = tpu.matmul %61, %62, %cst_31 {dimension_numbers = #tpu.dot_dimension_numbers<[1], [0], [0], [1], [0, 0, 1, 1], [], []>} : vector<16x32xf32>, vector<32x32xf32>, vector<16x32xf32> -> vector<16x32xf32>
    %c7 = arith.constant 7 : index
    %c0_32 = arith.constant 0 : index
    %64 = vector.load %arg6[%c7, %c0_32] : memref<80x128xf32, #tpu.memory_space<vmem>>, vector<1x32xf32>
    %65 = vector.broadcast %64 : vector<1x32xf32> to vector<16x32xf32>
    %66 = arith.addf %63, %65 : vector<16x32xf32>
    %67 = arith.addf %33, %66 : vector<16x32xf32>
    %c2 = arith.constant 2 : index
    %c0_33 = arith.constant 0 : index
    %68 = vector.load %arg6[%c2, %c0_33] : memref<80x128xf32, #tpu.memory_space<vmem>>, vector<1x32xf32>
    %c3 = arith.constant 3 : index
    %c0_34 = arith.constant 0 : index
    %69 = vector.load %arg6[%c3, %c0_34] : memref<80x128xf32, #tpu.memory_space<vmem>>, vector<1x32xf32>
    %cst_35 = arith.constant dense<0.000000e+00> : vector<16xf32>
    %70 = vector.multi_reduction <add>, %67, %cst_35 [1] : vector<16x32xf32> to vector<16xf32>
    %71 = vector.shape_cast %70 : vector<16xf32> to vector<16x1xf32>
    %cst_36 = arith.constant 3.200000e+01 : f32
    %72 = vector.broadcast %cst_36 : f32 to vector<16x1xf32>
    %73 = arith.divf %71, %72 : vector<16x1xf32>
    %74 = vector.broadcast %73 : vector<16x1xf32> to vector<16x32xf32>
    %75 = arith.subf %67, %74 : vector<16x32xf32>
    %76 = arith.mulf %75, %75 : vector<16x32xf32>
    %cst_37 = arith.constant dense<0.000000e+00> : vector<16xf32>
    %77 = vector.multi_reduction <add>, %76, %cst_37 [1] : vector<16x32xf32> to vector<16xf32>
    %78 = vector.shape_cast %77 : vector<16xf32> to vector<16x1xf32>
    %cst_38 = arith.constant 3.200000e+01 : f32
    %79 = vector.broadcast %cst_38 : f32 to vector<16x1xf32>
    %80 = arith.divf %78, %79 : vector<16x1xf32>
    %81 = vector.broadcast %73 : vector<16x1xf32> to vector<16x32xf32>
    %82 = arith.subf %67, %81 : vector<16x32xf32>
    %cst_39 = arith.constant 9.99999996E-13 : f32
    %83 = vector.broadcast %cst_39 : f32 to vector<16x1xf32>
    %84 = arith.addf %80, %83 : vector<16x1xf32>
    %85 = math.rsqrt %84 : vector<16x1xf32>
    %86 = vector.broadcast %85 : vector<16x1xf32> to vector<16x32xf32>
    %87 = arith.mulf %82, %86 : vector<16x32xf32>
    %88 = vector.broadcast %68 : vector<1x32xf32> to vector<16x32xf32>
    %89 = arith.mulf %87, %88 : vector<16x32xf32>
    %90 = vector.broadcast %69 : vector<1x32xf32> to vector<16x32xf32>
    %91 = arith.addf %89, %90 : vector<16x32xf32>
    %c64 = arith.constant 64 : index
    %c0_40 = arith.constant 0 : index
    %92 = vector.load %arg4[%c64, %c0_40] : memref<128x64xf32, #tpu.memory_space<vmem>>, vector<32x64xf32>
    %cst_41 = arith.constant dense<0.000000e+00> : vector<16x64xf32>
    %93 = tpu.matmul %91, %92, %cst_41 {dimension_numbers = #tpu.dot_dimension_numbers<[1], [0], [0], [1], [0, 0, 1, 1], [], []>} : vector<16x32xf32>, vector<32x64xf32>, vector<16x64xf32> -> vector<16x64xf32>
    %c8 = arith.constant 8 : index
    %c0_42 = arith.constant 0 : index
    %94 = vector.load %arg6[%c8, %c0_42] : memref<80x128xf32, #tpu.memory_space<vmem>>, vector<1x64xf32>
    %95 = vector.broadcast %94 : vector<1x64xf32> to vector<16x64xf32>
    %96 = arith.addf %93, %95 : vector<16x64xf32>
    %97 = arith.mulf %96, %96 : vector<16x64xf32>
    %98 = arith.mulf %96, %97 : vector<16x64xf32>
    %cst_43 = arith.constant 4.471500e-02 : f32
    %99 = vector.broadcast %cst_43 : f32 to vector<16x64xf32>
    %100 = arith.mulf %99, %98 : vector<16x64xf32>
    %101 = arith.addf %96, %100 : vector<16x64xf32>
    %cst_44 = arith.constant 0.797884583 : f32
    %102 = vector.broadcast %cst_44 : f32 to vector<16x64xf32>
    %103 = arith.mulf %102, %101 : vector<16x64xf32>
    %104 = math.tanh %103 : vector<16x64xf32>
    %cst_45 = arith.constant 1.000000e+00 : f32
    %105 = vector.broadcast %cst_45 : f32 to vector<16x64xf32>
    %106 = arith.addf %105, %104 : vector<16x64xf32>
    %cst_46 = arith.constant 5.000000e-01 : f32
    %107 = vector.broadcast %cst_46 : f32 to vector<16x64xf32>
    %108 = arith.mulf %107, %106 : vector<16x64xf32>
    %109 = arith.mulf %96, %108 : vector<16x64xf32>
    %c240 = arith.constant 240 : index
    %c0_47 = arith.constant 0 : index
    %110 = vector.load %arg3[%c240, %c0_47] : memref<304x32xf32, #tpu.memory_space<vmem>>, vector<64x32xf32>
    %cst_48 = arith.constant dense<0.000000e+00> : vector<16x32xf32>
    %111 = tpu.matmul %109, %110, %cst_48 {dimension_numbers = #tpu.dot_dimension_numbers<[1], [0], [0], [1], [0, 0, 1, 1], [], []>} : vector<16x64xf32>, vector<64x32xf32>, vector<16x32xf32> -> vector<16x32xf32>
    %c9 = arith.constant 9 : index
    %c0_49 = arith.constant 0 : index
    %112 = vector.load %arg6[%c9, %c0_49] : memref<80x128xf32, #tpu.memory_space<vmem>>, vector<1x32xf32>
    %113 = vector.broadcast %112 : vector<1x32xf32> to vector<16x32xf32>
    %114 = arith.addf %111, %113 : vector<16x32xf32>
    %115 = arith.addf %91, %114 : vector<16x32xf32>
    %c4 = arith.constant 4 : index
    %c0_50 = arith.constant 0 : index
    %116 = vector.load %arg6[%c4, %c0_50] : memref<80x128xf32, #tpu.memory_space<vmem>>, vector<1x32xf32>
    %c5 = arith.constant 5 : index
    %c0_51 = arith.constant 0 : index
    %117 = vector.load %arg6[%c5, %c0_51] : memref<80x128xf32, #tpu.memory_space<vmem>>, vector<1x32xf32>
    %cst_52 = arith.constant dense<0.000000e+00> : vector<16xf32>
    %118 = vector.multi_reduction <add>, %115, %cst_52 [1] : vector<16x32xf32> to vector<16xf32>
    %119 = vector.shape_cast %118 : vector<16xf32> to vector<16x1xf32>
    %cst_53 = arith.constant 3.200000e+01 : f32
    %120 = vector.broadcast %cst_53 : f32 to vector<16x1xf32>
    %121 = arith.divf %119, %120 : vector<16x1xf32>
    %122 = vector.broadcast %121 : vector<16x1xf32> to vector<16x32xf32>
    %123 = arith.subf %115, %122 : vector<16x32xf32>
    %124 = arith.mulf %123, %123 : vector<16x32xf32>
    %cst_54 = arith.constant dense<0.000000e+00> : vector<16xf32>
    %125 = vector.multi_reduction <add>, %124, %cst_54 [1] : vector<16x32xf32> to vector<16xf32>
    %126 = vector.shape_cast %125 : vector<16xf32> to vector<16x1xf32>
    %cst_55 = arith.constant 3.200000e+01 : f32
    %127 = vector.broadcast %cst_55 : f32 to vector<16x1xf32>
    %128 = arith.divf %126, %127 : vector<16x1xf32>
    %129 = vector.broadcast %121 : vector<16x1xf32> to vector<16x32xf32>
    %130 = arith.subf %115, %129 : vector<16x32xf32>
    %cst_56 = arith.constant 9.99999996E-13 : f32
    %131 = vector.broadcast %cst_56 : f32 to vector<16x1xf32>
    %132 = arith.addf %128, %131 : vector<16x1xf32>
    %133 = math.rsqrt %132 : vector<16x1xf32>
    %134 = vector.broadcast %133 : vector<16x1xf32> to vector<16x32xf32>
    %135 = arith.mulf %130, %134 : vector<16x32xf32>
    %136 = vector.broadcast %116 : vector<1x32xf32> to vector<16x32xf32>
    %137 = arith.mulf %135, %136 : vector<16x32xf32>
    %138 = vector.broadcast %117 : vector<1x32xf32> to vector<16x32xf32>
    %139 = arith.addf %137, %138 : vector<16x32xf32>
    %c96 = arith.constant 96 : index
    %c0_57 = arith.constant 0 : index
    %140 = vector.load %arg4[%c96, %c0_57] : memref<128x64xf32, #tpu.memory_space<vmem>>, vector<32x64xf32>
    %cst_58 = arith.constant dense<0.000000e+00> : vector<16x64xf32>
    %141 = tpu.matmul %139, %140, %cst_58 {dimension_numbers = #tpu.dot_dimension_numbers<[1], [0], [0], [1], [0, 0, 1, 1], [], []>} : vector<16x32xf32>, vector<32x64xf32>, vector<16x64xf32> -> vector<16x64xf32>
    %c10 = arith.constant 10 : index
    %c0_59 = arith.constant 0 : index
    %142 = vector.load %arg6[%c10, %c0_59] : memref<80x128xf32, #tpu.memory_space<vmem>>, vector<1x64xf32>
    %143 = vector.broadcast %142 : vector<1x64xf32> to vector<16x64xf32>
    %144 = arith.addf %141, %143 : vector<16x64xf32>
    %cst_60 = arith.constant 0.000000e+00 : f32
    %145 = vector.broadcast %cst_60 : f32 to vector<16x64xf32>
    %146 = arith.maximumf %144, %145 : vector<16x64xf32>
    %c16 = arith.constant 16 : index
    %c0_61 = arith.constant 0 : index
    %147 = vector.load %arg6[%c16, %c0_61] : memref<80x128xf32, #tpu.memory_space<vmem>>, vector<64x128xf32>
    %cst_62 = arith.constant dense<0.000000e+00> : vector<16x128xf32>
    %148 = tpu.matmul %146, %147, %cst_62 {dimension_numbers = #tpu.dot_dimension_numbers<[1], [0], [0], [1], [0, 0, 1, 1], [], []>} : vector<16x64xf32>, vector<64x128xf32>, vector<16x128xf32> -> vector<16x128xf32>
    %c11 = arith.constant 11 : index
    %c0_63 = arith.constant 0 : index
    %149 = vector.load %arg6[%c11, %c0_63] : memref<80x128xf32, #tpu.memory_space<vmem>>, vector<1x128xf32>
    %150 = vector.broadcast %149 : vector<1x128xf32> to vector<16x128xf32>
    %151 = arith.addf %148, %150 : vector<16x128xf32>
    %c0_64 = arith.constant 0 : index
    %c0_65 = arith.constant 0 : index
    %152 = vector.load %arg7[%c0_64, %c0_65] : memref<16x128xf32, #tpu.memory_space<vmem>>, vector<16x128xf32>
    tpu.vector_store %arg7[%c0_64, %c0_65], %151 {strides = array<i32>} : memref<16x128xf32, #tpu.memory_space<vmem>>, vector<16x128xf32>,
    return
  }
}

</mosaic_0001>

<llo_original>
// kernel: _lambda_.1
$region0: #{_lambda_.1}
  #allocation0 [shape = 'u32[]', space=smem, size = 0x4, offset = 0x4, fixed_abs, tag = 'smem constant byte address 0x4 - core index']
  #allocation1 [shape = 'u32[144,128]{1,0:T(1,128)}', space=vmem, size = 0x12000, scoped, tag = 'internal scratch']
  %s0 = inlined_call_operand.vmem [shape: s32[16,1], index: 0, kind: input, shape index: {}]
  %s1 = inlined_call_operand.vmem [shape: f32[16,64], index: 1, kind: input, shape index: {}]
  %s2 = inlined_call_operand.hbm [shape: f32[64,16], index: 2, kind: input, shape index: {}]
  %s3 = inlined_call_operand.hbm [shape: f32[304,32], index: 3, kind: input, shape index: {}]
  %s4 = inlined_call_operand.hbm [shape: f32[128,64], index: 4, kind: input, shape index: {}]
  %s5 = inlined_call_operand.hbm [shape: f32[32,96], index: 5, kind: input, shape index: {}]
  %s6 = inlined_call_operand.vmem [shape: f32[80,128], index: 6, kind: input, shape index: {}]
  %s7 = inlined_call_operand.vmem [shape: f32[16,128], index: 7, kind: output, shape index: {}]
  %s8 = sld [smem:[#allocation0]]
  $region54: #{_lambda_.1} parent=0
    _
  %s10 = ssub.s32 1, %s8
  %s11 = scalar_select 0, %s10, %s8
  $region1: #{_lambda_.1} parent=0
    #allocation2 [shape = 'u8[32768]{0}', space=vmem, size = 0x8000, scoped, tag = 'input window, operand 2, single buffered']
    #allocation3 [shape = 's32[1]{0}', space=sflag, size = 0x4, scoped, tag = 'scoped memory for _lambda_.1']
    #allocation4 [shape = 'u8[155648]{0}', space=vmem, size = 0x26000, scoped, tag = 'input window, operand 3, single buffered']
    #allocation5 [shape = 's32[1]{0}', space=sflag, size = 0x4, scoped, tag = 'scoped memory for _lambda_.1']
    #allocation6 [shape = 'u8[65536]{0}', space=vmem, size = 0x10000, scoped, tag = 'input window, operand 4, single buffered']
    #allocation7 [shape = 'u8[16384]{0}', space=vmem, size = 0x4000, scoped, tag = 'input window, operand 5, single buffered']
    #allocation8 [shape = 's32[1]{0}', space=sflag, size = 0x4, scoped, tag = 'scoped memory for _lambda_.1']
    %12 = vsyncpa [#allocation3], 0
    %13 = vsyncpa [#allocation5], 0
    %14 = vsyncpa [#allocation8], 0
    // Predicated region
    $region2: #{_lambda_.1} parent=1 // pred_check
      _
    $region3: #{_lambda_.1} parent=1 // pred_check_branch
      %16 = sbr.rel (0) target = $region5
    $region4: #{_lambda_.1} parent=1 // pred_region
      _
    $region5: #{_lambda_.1} parent=1 // pred_fallthru
      _
    // Predicated region
    $region6: #{_lambda_.1} parent=1 // pred_check
      _
    $region7: #{_lambda_.1} parent=1 // pred_check_branch
      %18 = sbr.rel (0) target = $region9
    $region8: #{_lambda_.1} parent=1 // pred_region
      _
    $region9: #{_lambda_.1} parent=1 // pred_fallthru
      _
    // Predicated region
    $region10: #{_lambda_.1} parent=1 // pred_check
      _
    $region11: #{_lambda_.1} parent=1 // pred_check_branch
      %20 = sbr.rel (0) target = $region13
    $region12: #{_lambda_.1} parent=1 // pred_region
      %s22 = ssub.s32 1024, 1024
      %23 = vsyncadd [#allocation3], %s22
      %s24 = sshll.u32 [#allocation2], 4
      %s25 = int_to_ptr.vmem [resolvable:$true] %s24
      %30 = dma.hbm_to_vmem [thread:$0]  %s2, 1024, %s25, [#allocation3], 128, 128, 8
    $region13: #{_lambda_.1} parent=1 // pred_fallthru
      _
    // Predicated region
    $region14: #{_lambda_.1} parent=1 // pred_check
      _
    $region15: #{_lambda_.1} parent=1 // pred_check_branch
      %32 = sbr.rel (0) target = $region17
    $region16: #{_lambda_.1} parent=1 // pred_region
      %s34 = ssub.s32 4864, 4864
      %35 = vsyncadd [#allocation5], %s34
      %s36 = sshll.u32 [#allocation4], 4
      %s37 = int_to_ptr.vmem [resolvable:$true] %s36
      %42 = dma.hbm_to_vmem [thread:$0]  %s3, 4864, %s37, [#allocation5], 128, 128, 8
    $region17: #{_lambda_.1} parent=1 // pred_fallthru
      _
    // Predicated region
    $region18: #{_lambda_.1} parent=1 // pred_check
      _
    $region19: #{_lambda_.1} parent=1 // pred_check_branch
      %44 = sbr.rel (0) target = $region21
    $region20: #{_lambda_.1} parent=1 // pred_region
      %s46 = ssub.s32 2048, 2048
      %47 = vsyncadd [#allocation5], %s46
      %s48 = sshll.u32 [#allocation6], 4
      %s49 = int_to_ptr.vmem [resolvable:$true] %s48
      %54 = dma.hbm_to_vmem [thread:$0]  %s4, 2048, %s49, [#allocation5], 128, 128, 8
    $region21: #{_lambda_.1} parent=1 // pred_fallthru
      _
    // Predicated region
    $region22: #{_lambda_.1} parent=1 // pred_check
      _
    $region23: #{_lambda_.1} parent=1 // pred_check_branch
      %56 = sbr.rel (0) target = $region25
    $region24: #{_lambda_.1} parent=1 // pred_region
      %s58 = ssub.s32 512, 512
      %59 = vsyncadd [#allocation8], %s58
      %s60 = sshll.u32 [#allocation7], 4
      %s61 = int_to_ptr.vmem [resolvable:$true] %s60
      %66 = dma.hbm_to_vmem [thread:$0]  %s5, 512, %s61, [#allocation8], 128, 128, 8
    $region25: #{_lambda_.1} parent=1 // pred_fallthru
      _
    // Predicated region
    $region26: #{_lambda_.1} parent=1 // pred_check
      _
    $region27: #{_lambda_.1} parent=1 // pred_check_branch
      %68 = sbr.rel (0) target = $region29
    $region28: #{_lambda_.1} parent=1 // pred_region
      _
    $region29: #{_lambda_.1} parent=1 // pred_fallthru
      _
    // Predicated region
    $region30: #{_lambda_.1} parent=1 // pred_check
      _
    $region31: #{_lambda_.1} parent=1 // pred_check_branch
      %70 = sbr.rel (0) target = $region33
    $region32: #{_lambda_.1} parent=1 // pred_region
      %71 = dma.done [#allocation3], 1024
    $region33: #{_lambda_.1} parent=1 // pred_fallthru
      _
    // Predicated region
    $region34: #{_lambda_.1} parent=1 // pred_check
      _
    $region35: #{_lambda_.1} parent=1 // pred_check_branch
      %73 = sbr.rel (0) target = $region37
    $region36: #{_lambda_.1} parent=1 // pred_region
      %74 = dma.done [#allocation5], 4864
    $region37: #{_lambda_.1} parent=1 // pred_fallthru
      _
    // Predicated region
    $region38: #{_lambda_.1} parent=1 // pred_check
      _
    $region39: #{_lambda_.1} parent=1 // pred_check_branch
      %76 = sbr.rel (0) target = $region41
    $region40: #{_lambda_.1} parent=1 // pred_region
      %77 = dma.done [#allocation5], 2048
    $region41: #{_lambda_.1} parent=1 // pred_fallthru
      _
    // Predicated region
    $region42: #{_lambda_.1} parent=1 // pred_check
      _
    $region43: #{_lambda_.1} parent=1 // pred_check_branch
      %79 = sbr.rel (0) target = $region45
    $region44: #{_lambda_.1} parent=1 // pred_region
      %80 = dma.done [#allocation8], 512
    $region45: #{_lambda_.1} parent=1 // pred_fallthru
      _
    %v81 = vld [vmem:[%s0] sm:$0xff]
    %v82 = vld [vmem:[%s0 + $0x8] sm:$0xff]
    %v83 = vlaneseq
    %v84 = vand.u32 %v83, 127
    %85 = vset.pattern.permute.xlu0 0
    %86 = vperm.xlu0 %85, %v81
    %v87 = vpop.permute.xlu0 %86
    %88 = vset.pattern.permute.xlu0 0
    %89 = vperm.xlu0 %88, %v82
    %v90 = vpop.permute.xlu0 %89
    %vm91 = vcmp.eq.s32.totalorder %v84, %v87
    %vm92 = vcmp.eq.s32.totalorder %v84, %v90
    %v93 = vsel %vm91, 1, 0
    %v94 = vsel %vm92, 1, 0
    %v95 = vcvt.s32.f32 %v93
    %v96 = vcvt.s32.f32 %v94
    %v97 = vld [vmem:[#allocation4] sm:$0xff]
    %v98 = vld [vmem:[#allocation4 + $0x8] sm:$0xff]
    %v99 = vld [vmem:[#allocation4 + $0x10] sm:$0xff]
    %v100 = vld [vmem:[#allocation4 + $0x18] sm:$0xff]
    %v101 = vld [vmem:[#allocation4 + $0x20] sm:$0xff]
    %v102 = vld [vmem:[#allocation4 + $0x28] sm:$0xff]
    %v103 = vld [vmem:[#allocation4 + $0x30] sm:$0xff]
    %v104 = vld [vmem:[#allocation4 + $0x38] sm:$0xff]
    %v105 = vld [vmem:[#allocation4 + $0x40] sm:$0xff]
    %v106 = vld [vmem:[#allocation4 + $0x48] sm:$0xff]
    %v107 = vld [vmem:[#allocation4 + $0x50] sm:$0xff]
    %v108 = vld [vmem:[#allocation4 + $0x58] sm:$0xff]
    %v109 = vld [vmem:[#allocation4 + $0x60] sm:$0xff]
    %v110 = vld [vmem:[#allocation4 + $0x68] sm:$0xff]
    %v111 = vld [vmem:[#allocation4 + $0x70] sm:$0xff]
    %v112 = vld [vmem:[#allocation4 + $0x78] sm:$0xff]
    %v113 = vld [vmem:[#allocation4 + $0x80] sm:$0xff]
    %v114 = vld [vmem:[#allocation4 + $0x88] sm:$0xff]
    %115 = vmatprep.subr.mxu0 0.0
    %116 = vmatpush1.msra.mxu0 %v97
    %117 = vmatprep.subr.mxu0 0.0
    %118 = vmatpush1.msra.mxu0 %v98
    %119 = vmatprep.subr.mxu0 0.0
    %120 = vmatpush1.msra.mxu0 %v99
    %121 = vmatprep.subr.mxu0 0.0
    %122 = vmatpush1.msra.mxu0 %v100
    %123 = vmatprep.subr.mxu0 0.0
    %124 = vmatpush1.msra.mxu0 %v101
    %125 = vmatprep.subr.mxu0 0.0
    %126 = vmatpush1.msra.mxu0 %v102
    %127 = vmatprep.subr.mxu0 0.0
    %128 = vmatpush1.msra.mxu0 %v103
    %129 = vmatprep.subr.mxu0 0.0
    %130 = vmatpush1.msra.mxu0 %v104
    %131 = vmatprep.subr.mxu0 0.0
    %132 = vmatpush1.msra.mxu0 %v105
    %133 = vmatprep.subr.mxu0 0.0
    %134 = vmatpush1.msra.mxu0 %v106
    %135 = vmatprep.subr.mxu0 0.0
    %136 = vmatpush1.msra.mxu0 %v107
    %137 = vmatprep.subr.mxu0 0.0
    %138 = vmatpush1.msra.mxu0 %v108
    %139 = vmatprep.subr.mxu0 0.0
    %140 = vmatpush1.msra.mxu0 %v109
    %141 = vmatprep.subr.mxu0 0.0
    %142 = vmatpush1.msra.mxu0 %v110
    %143 = vmatprep.subr.mxu0 0.0
    %144 = vmatpush1.msra.mxu0 %v111
    %145 = vmatprep.subr.mxu0 0.0
    %146 = vmatpush1.msra.mxu0 %v112
    %147 = vmatprep.subr.mxu0 0.0
    %148 = vmatpush1.msra.mxu0 0.0
    %149 = vmatprep.subr.mxu0 0.0
    %150 = vmatpush1.msra.mxu0 0.0
    %151 = vmatprep.subr.mxu0 0.0
    %152 = vmatpush1.msra.mxu0 0.0
    %153 = vmatprep.subr.mxu0 0.0
    %154 = vmatpush1.msra.mxu0 0.0
    %155 = vmatprep.subr.mxu0 0.0
    %156 = vmatpush1.msra.mxu0 0.0
    %157 = vmatprep.subr.mxu0 0.0
    %158 = vmatpush1.msra.mxu0 0.0
    %159 = vmatprep.subr.mxu0 0.0
    %160 = vmatpush1.msra.mxu0 0.0
    %161 = vmatprep.subr.mxu0 0.0
    %162 = vmatpush1.msra.mxu0 0.0
    %163 = vmatprep.subr.mxu0 0.0
    %164 = vmatpush1.msra.mxu0 0.0
    %165 = vmatprep.subr.mxu0 0.0
    %166 = vmatpush1.msra.mxu0 0.0
    %167 = vmatprep.subr.mxu0 0.0
    %168 = vmatpush1.msra.mxu0 0.0
    %169 = vmatprep.subr.mxu0 0.0
    %170 = vmatpush1.msra.mxu0 0.0
    %171 = vmatprep.subr.mxu0 0.0
    %172 = vmatpush1.msra.mxu0 0.0
    %173 = vmatprep.subr.mxu0 0.0
    %174 = vmatpush1.msra.mxu0 0.0
    %175 = vmatprep.subr.mxu0 0.0
    %176 = vmatpush1.msra.mxu0 0.0
    %177 = vmatprep.subr.mxu0 0.0
    %178 = vmatpush1.msra.mxu0 0.0
    %179 = vmatprep.mubr.f32.mxu0 0.0
    %180 = vmatmul.mubr.f32.gmra.mrb[0].mxu0 %v95
    %v181 = vpop.f32.mrb[0].mxu0
    %v182 = vadd.f32 %v113, %v181
    %v183 = vpop.f32.mrb[0].mxu0
    %184 = vmatprep.mubr.f32.mxu0 0.0
    %185 = vmatmul.mubr.f32.gmra.mrb[0].mxu0 %v96
    %v186 = vpop.f32.mrb[0].mxu0
    %v187 = vadd.f32 %v114, %v186
    %v188 = vpop.f32.mrb[0].mxu0
    %189 = vdwg.mxu0
    %v190 = vld [vmem:[%s6] sm:$0x1]
    %v191 = vld [vmem:[%s6 + $0x1] sm:$0x1]
    %vm192 = vcmask 261120
    %v193 = vsel %vm192, %v182, 0.0
    %194 = vadd.xlane.f32.xlu0 %v193
    %v195 = vpop.xlane.xlu0 %194
    %v196 = vsel %vm192, %v187, 0.0
    %197 = vadd.xlane.f32.xlu0 %v196
    %v198 = vpop.xlane.xlu0 %197
    %v199 = vrcp.pop 32.0
    %v200 = vmul.f32 %v195, %v199
    %v201 = vmul.f32 %v198, %v199
    %v202 = vsub.f32 %v182, %v200
    %v203 = vsub.f32 %v187, %v201
    %v204 = vmul.f32 %v202, %v202
    %v205 = vmul.f32 %v203, %v203
    %v206 = vsel %vm192, %v204, 0.0
    %207 = vadd.xlane.f32.xlu0 %v206
    %v208 = vpop.xlane.xlu0 %207
    %v209 = vsel %vm192, %v205, 0.0
    %210 = vadd.xlane.f32.xlu0 %v209
    %v211 = vpop.xlane.xlu0 %210
    %v212 = vmul.f32 %v208, %v199
    %v213 = vmul.f32 %v211, %v199
    %v214 = vadd.f32 %v212, 1e-12
    %v215 = vadd.f32 %v213, 1e-12
    %v216 = vrsqrt.pop %v214
    %v217 = vrsqrt.pop %v215
    %v218 = vmul.f32 %v202, %v216
    %v219 = vmul.f32 %v203, %v217
    %v220 = vlaneseq
    %v221 = vshrl.u32 %v220, 7
    %v222 = vsub.s32 0, %v221
    %v223 = vrot.slane %v190, %v222
    %v224 = vmul.f32 %v218, %v223
    %v225 = vmul.f32 %v219, %v223
    %v226 = vlaneseq
    %v227 = vshrl.u32 %v226, 7
    %v228 = vsub.s32 0, %v227
    %v229 = vrot.slane %v191, %v228
    %v230 = vadd.f32 %v224, %v229
    %v231 = vadd.f32 %v225, %v229
    %v232 = vld [vmem:[#allocation7] sm:$0xff]
    %v233 = vld [vmem:[#allocation7 + $0x8] sm:$0xff]
    %v234 = vld [vmem:[#allocation7 + $0x10] sm:$0xff]
    %v235 = vld [vmem:[#allocation7 + $0x18] sm:$0xff]
    %v236 = vld [vmem:[%s6 + $0x6] sm:$0x1]
    %v237 = vlaneseq
    %v238 = vshrl.u32 %v237, 7
    %v239 = vsub.s32 0, %v238
    %v240 = vrot.slane %v236, %v239
    %v242 = vsel %vm192, %v230, 0
    %v245 = vsel %vm192, %v231, 0
    %247 = vmatprep.subr.mxu0 0.0
    %248 = vmatpush1.msra.mxu0 %v232
    %249 = vmatprep.subr.mxu0 0.0
    %250 = vmatpush1.msra.mxu0 %v233
    %251 = vmatprep.subr.mxu0 0.0
    %252 = vmatpush1.msra.mxu0 %v234
    %253 = vmatprep.subr.mxu0 0.0
    %254 = vmatpush1.msra.mxu0 %v235
    %255 = vmatprep.subr.mxu0 0.0
    %256 = vmatpush1.msra.mxu0 0.0
    %257 = vmatprep.subr.mxu0 0.0
    %258 = vmatpush1.msra.mxu0 0.0
    %259 = vmatprep.subr.mxu0 0.0
    %260 = vmatpush1.msra.mxu0 0.0
    %261 = vmatprep.subr.mxu0 0.0
    %262 = vmatpush1.msra.mxu0 0.0
    %263 = vmatprep.subr.mxu0 0.0
    %264 = vmatpush1.msra.mxu0 0.0
    %265 = vmatprep.subr.mxu0 0.0
    %266 = vmatpush1.msra.mxu0 0.0
    %267 = vmatprep.subr.mxu0 0.0
    %268 = vmatpush1.msra.mxu0 0.0
    %269 = vmatprep.subr.mxu0 0.0
    %270 = vmatpush1.msra.mxu0 0.0
    %271 = vmatprep.subr.mxu0 0.0
    %272 = vmatpush1.msra.mxu0 0.0
    %273 = vmatprep.subr.mxu0 0.0
    %274 = vmatpush1.msra.mxu0 0.0
    %275 = vmatprep.subr.mxu0 0.0
    %276 = vmatpush1.msra.mxu0 0.0
    %277 = vmatprep.subr.mxu0 0.0
    %278 = vmatpush1.msra.mxu0 0.0
    %279 = vmatprep.subr.mxu0 0.0
    %280 = vmatpush1.msra.mxu0 0.0
    %281 = vmatprep.subr.mxu0 0.0
    %282 = vmatpush1.msra.mxu0 0.0
    %283 = vmatprep.subr.mxu0 0.0
    %284 = vmatpush1.msra.mxu0 0.0
    %285 = vmatprep.subr.mxu0 0.0
    %286 = vmatpush1.msra.mxu0 0.0
    %287 = vmatprep.subr.mxu0 0.0
    %288 = vmatpush1.msra.mxu0 0.0
    %289 = vmatprep.subr.mxu0 0.0
    %290 = vmatpush1.msra.mxu0 0.0
    %291 = vmatprep.subr.mxu0 0.0
    %292 = vmatpush1.msra.mxu0 0.0
    %293 = vmatprep.subr.mxu0 0.0
    %294 = vmatpush1.msra.mxu0 0.0
    %295 = vmatprep.subr.mxu0 0.0
    %296 = vmatpush1.msra.mxu0 0.0
    %297 = vmatprep.subr.mxu0 0.0
    %298 = vmatpush1.msra.mxu0 0.0
    %299 = vmatprep.subr.mxu0 0.0
    %300 = vmatpush1.msra.mxu0 0.0
    %301 = vmatprep.subr.mxu0 0.0
    %302 = vmatpush1.msra.mxu0 0.0
    %303 = vmatprep.subr.mxu0 0.0
    %304 = vmatpush1.msra.mxu0 0.0
    %305 = vmatprep.subr.mxu0 0.0
    %306 = vmatpush1.msra.mxu0 0.0
    %307 = vmatprep.subr.mxu0 0.0
    %308 = vmatpush1.msra.mxu0 0.0
    %309 = vmatprep.subr.mxu0 0.0
    %310 = vmatpush1.msra.mxu0 0.0
    %311 = vmatprep.mubr.f32.mxu0 0.0
    %312 = vmatmul.mubr.f32.gmra.mrb[0].mxu0 %v242
    %v313 = vpop.f32.mrb[0].mxu0
    %v314 = vadd.f32 %v240, %v313
    %v315 = vpop.f32.mrb[0].mxu0
    %316 = vmatprep.mubr.f32.mxu0 0.0
    %317 = vmatmul.mubr.f32.gmra.mrb[0].mxu0 %v245
    %v318 = vpop.f32.mrb[0].mxu0
    %v319 = vadd.f32 %v240, %v318
    %v320 = vpop.f32.mrb[0].mxu0
    %321 = vdwg.mxu0
    %v322 = vld [vmem:[#allocation4 + $0x90] sm:$0xff]
    %v323 = vld [vmem:[#allocation4 + $0x98] sm:$0xff]
    %v324 = vld [vmem:[#allocation4 + $0xa0] sm:$0xff]
    %v325 = vld [vmem:[#allocation4 + $0xa8] sm:$0xff]
    %v326 = vld [vmem:[#allocation4 + $0xb0] sm:$0xff]
    %v327 = vld [vmem:[#allocation4 + $0xb8] sm:$0xff]
    %v328 = vld [vmem:[#allocation4 + $0xc0] sm:$0xff]
    %v329 = vld [vmem:[#allocation4 + $0xc8] sm:$0xff]
    %v330 = vld [vmem:[#allocation2] sm:$0xff]
    %v331 = vld [vmem:[#allocation2 + $0x8] sm:$0xff]
    %v332 = vld [vmem:[#allocation2 + $0x10] sm:$0xff]
    %v333 = vld [vmem:[#allocation2 + $0x18] sm:$0xff]
    %v334 = vld [vmem:[#allocation2 + $0x20] sm:$0xff]
    %v335 = vld [vmem:[#allocation2 + $0x28] sm:$0xff]
    %v336 = vld [vmem:[#allocation2 + $0x30] sm:$0xff]
    %v337 = vld [vmem:[#allocation2 + $0x38] sm:$0xff]
    %340 = vrot.lane.b32.xlu0 %v314, 96
    %v341 = vpop.permute.xlu0 %340
    %342 = vrot.lane.b32.xlu0 %v319, 96
    %v343 = vpop.permute.xlu0 %342
    %vm346 = vcmask 130048
    %v348 = vsel %vm346, %v330, 0
    %v351 = vsel %vm346, %v331, 0
    %v354 = vsel %vm346, %v332, 0
    %v357 = vsel %vm346, %v333, 0
    %v360 = vsel %vm346, %v334, 0
    %v363 = vsel %vm346, %v335, 0
    %v366 = vsel %vm346, %v336, 0
    %v369 = vsel %vm346, %v337, 0
    %371 = vmatprep.subr.mxu0 0.0
    %372 = vmatpush1.msra.mxu0 %v341
    %373 = vmatprep.subr.mxu0 0.0
    %374 = vmatpush1.msra.mxu0 %v343
    %375 = vmatprep.subr.mxu0 0.0
    %376 = vmatpush1.msra.mxu0 0.0
    %377 = vmatprep.subr.mxu0 0.0
    %378 = vmatpush1.msra.mxu0 0.0
    %379 = vmatprep.subr.mxu0 0.0
    %380 = vmatpush1.msra.mxu0 0.0
    %381 = vmatprep.subr.mxu0 0.0
    %382 = vmatpush1.msra.mxu0 0.0
    %383 = vmatprep.subr.mxu0 0.0
    %384 = vmatpush1.msra.mxu0 0.0
    %385 = vmatprep.subr.mxu0 0.0
    %386 = vmatpush1.msra.mxu0 0.0
    %387 = vmatprep.subr.mxu0 0.0
    %388 = vmatpush1.msra.mxu0 0.0
    %389 = vmatprep.subr.mxu0 0.0
    %390 = vmatpush1.msra.mxu0 0.0
    %391 = vmatprep.subr.mxu0 0.0
    %392 = vmatpush1.msra.mxu0 0.0
    %393 = vmatprep.subr.mxu0 0.0
    %394 = vmatpush1.msra.mxu0 0.0
    %395 = vmatprep.subr.mxu0 0.0
    %396 = vmatpush1.msra.mxu0 0.0
    %397 = vmatprep.subr.mxu0 0.0
    %398 = vmatpush1.msra.mxu0 0.0
    %399 = vmatprep.subr.mxu0 0.0
    %400 = vmatpush1.msra.mxu0 0.0
    %401 = vmatprep.subr.mxu0 0.0
    %402 = vmatpush1.msra.mxu0 0.0
    %403 = vmatprep.subr.mxu0 0.0
    %404 = vmatpush1.msra.mxu0 0.0
    %405 = vmatprep.subr.mxu0 0.0
    %406 = vmatpush1.msra.mxu0 0.0
    %407 = vmatprep.subr.mxu0 0.0
    %408 = vmatpush1.msra.mxu0 0.0
    %409 = vmatprep.subr.mxu0 0.0
    %410 = vmatpush1.msra.mxu0 0.0
    %411 = vmatprep.subr.mxu0 0.0
    %412 = vmatpush1.msra.mxu0 0.0
    %413 = vmatprep.subr.mxu0 0.0
    %414 = vmatpush1.msra.mxu0 0.0
    %415 = vmatprep.subr.mxu0 0.0
    %416 = vmatpush1.msra.mxu0 0.0
    %417 = vmatprep.subr.mxu0 0.0
    %418 = vmatpush1.msra.mxu0 0.0
    %419 = vmatprep.subr.mxu0 0.0
    %420 = vmatpush1.msra.mxu0 0.0
    %421 = vmatprep.subr.mxu0 0.0
    %422 = vmatpush1.msra.mxu0 0.0
    %423 = vmatprep.subr.mxu0 0.0
    %424 = vmatpush1.msra.mxu0 0.0
    %425 = vmatprep.subr.mxu0 0.0
    %426 = vmatpush1.msra.mxu0 0.0
    %427 = vmatprep.subr.mxu0 0.0
    %428 = vmatpush1.msra.mxu0 0.0
    %429 = vmatprep.subr.mxu0 0.0
    %430 = vmatpush1.msra.mxu0 0.0
    %431 = vmatprep.subr.mxu0 0.0
    %432 = vmatpush1.msra.mxu0 0.0
    %433 = vmatprep.subr.mxu0 0.0
    %434 = vmatpush1.msra.mxu0 0.0
    %435 = vmatprep.mubr.f32.mxu0 0.0
    %436 = vmatmul.mubr.f32.gmra.mrb[0].mxu0 %v348
    %v437 = vpop.f32.mrb[0].mxu0
    %v438 = vadd.f32 0.0, %v437
    %v439 = vpop.f32.mrb[0].mxu0
    %440 = vmatprep.mubr.f32.mxu0 0.0
    %441 = vmatmul.mubr.f32.gmra.mrb[0].mxu0 %v351
    %v442 = vpop.f32.mrb[0].mxu0
    %v443 = vadd.f32 0.0, %v442
    %v444 = vpop.f32.mrb[0].mxu0
    %445 = vmatprep.mubr.f32.mxu0 0.0
    %446 = vmatmul.mubr.f32.gmra.mrb[0].mxu0 %v354
    %v447 = vpop.f32.mrb[0].mxu0
    %v448 = vadd.f32 0.0, %v447
    %v449 = vpop.f32.mrb[0].mxu0
    %450 = vmatprep.mubr.f32.mxu0 0.0
    %451 = vmatmul.mubr.f32.gmra.mrb[0].mxu0 %v357
    %v452 = vpop.f32.mrb[0].mxu0
    %v453 = vadd.f32 0.0, %v452
    %v454 = vpop.f32.mrb[0].mxu0
    %455 = vmatprep.mubr.f32.mxu0 0.0
    %456 = vmatmul.mubr.f32.gmra.mrb[0].mxu0 %v360
    %v457 = vpop.f32.mrb[0].mxu0
    %v458 = vadd.f32 0.0, %v457
    %v459 = vpop.f32.mrb[0].mxu0
    %460 = vmatprep.mubr.f32.mxu0 0.0
    %461 = vmatmul.mubr.f32.gmra.mrb[0].mxu0 %v363
    %v462 = vpop.f32.mrb[0].mxu0
    %v463 = vadd.f32 0.0, %v462
    %v464 = vpop.f32.mrb[0].mxu0
    %465 = vmatprep.mubr.f32.mxu0 0.0
    %466 = vmatmul.mubr.f32.gmra.mrb[0].mxu0 %v366
    %v467 = vpop.f32.mrb[0].mxu0
    %v468 = vadd.f32 0.0, %v467
    %v469 = vpop.f32.mrb[0].mxu0
    %470 = vmatprep.mubr.f32.mxu0 0.0
    %471 = vmatmul.mubr.f32.gmra.mrb[0].mxu0 %v369
    %v472 = vpop.f32.mrb[0].mxu0
    %v473 = vadd.f32 0.0, %v472
    %v474 = vpop.f32.mrb[0].mxu0
    %475 = vdwg.mxu0
    %v476 = vmul.f32 %v438, %v322
    %v477 = vmul.f32 %v443, %v323
    %v478 = vmul.f32 %v448, %v324
    %v479 = vmul.f32 %v453, %v325
    %v480 = vmul.f32 %v458, %v326
    %v481 = vmul.f32 %v463, %v327
    %v482 = vmul.f32 %v468, %v328
    %v483 = vmul.f32 %v473, %v329
    %484 = vrot.lane.b32.xlu0 %v314, 64
    %v485 = vpop.permute.xlu0 %484
    %486 = vrot.lane.b32.xlu0 %v319, 64
    %v487 = vpop.permute.xlu0 %486
    %490 = vmatprep.subr.mxu0 0.0
    %491 = vmatpush1.msra.mxu0 %v485
    %492 = vmatprep.subr.mxu0 0.0
    %493 = vmatpush1.msra.mxu0 %v487
    %494 = vmatprep.subr.mxu0 0.0
    %495 = vmatpush1.msra.mxu0 0.0
    %496 = vmatprep.subr.mxu0 0.0
    %497 = vmatpush1.msra.mxu0 0.0
    %498 = vmatprep.subr.mxu0 0.0
    %499 = vmatpush1.msra.mxu0 0.0
    %500 = vmatprep.subr.mxu0 0.0
    %501 = vmatpush1.msra.mxu0 0.0
    %502 = vmatprep.subr.mxu0 0.0
    %503 = vmatpush1.msra.mxu0 0.0
    %504 = vmatprep.subr.mxu0 0.0
    %505 = vmatpush1.msra.mxu0 0.0
    %506 = vmatprep.subr.mxu0 0.0
    %507 = vmatpush1.msra.mxu0 0.0
    %508 = vmatprep.subr.mxu0 0.0
    %509 = vmatpush1.msra.mxu0 0.0
    %510 = vmatprep.subr.mxu0 0.0
    %511 = vmatpush1.msra.mxu0 0.0
    %512 = vmatprep.subr.mxu0 0.0
    %513 = vmatpush1.msra.mxu0 0.0
    %514 = vmatprep.subr.mxu0 0.0
    %515 = vmatpush1.msra.mxu0 0.0
    %516 = vmatprep.subr.mxu0 0.0
    %517 = vmatpush1.msra.mxu0 0.0
    %518 = vmatprep.subr.mxu0 0.0
    %519 = vmatpush1.msra.mxu0 0.0
    %520 = vmatprep.subr.mxu0 0.0
    %521 = vmatpush1.msra.mxu0 0.0
    %522 = vmatprep.subr.mxu0 0.0
    %523 = vmatpush1.msra.mxu0 0.0
    %524 = vmatprep.subr.mxu0 0.0
    %525 = vmatpush1.msra.mxu0 0.0
    %526 = vmatprep.subr.mxu0 0.0
    %527 = vmatpush1.msra.mxu0 0.0
    %528 = vmatprep.subr.mxu0 0.0
    %529 = vmatpush1.msra.mxu0 0.0
    %530 = vmatprep.subr.mxu0 0.0
    %531 = vmatpush1.msra.mxu0 0.0
    %532 = vmatprep.subr.mxu0 0.0
    %533 = vmatpush1.msra.mxu0 0.0
    %534 = vmatprep.subr.mxu0 0.0
    %535 = vmatpush1.msra.mxu0 0.0
    %536 = vmatprep.subr.mxu0 0.0
    %537 = vmatpush1.msra.mxu0 0.0
    %538 = vmatprep.subr.mxu0 0.0
    %539 = vmatpush1.msra.mxu0 0.0
    %540 = vmatprep.subr.mxu0 0.0
    %541 = vmatpush1.msra.mxu0 0.0
    %542 = vmatprep.subr.mxu0 0.0
    %543 = vmatpush1.msra.mxu0 0.0
    %544 = vmatprep.subr.mxu0 0.0
    %545 = vmatpush1.msra.mxu0 0.0
    %546 = vmatprep.subr.mxu0 0.0
    %547 = vmatpush1.msra.mxu0 0.0
    %548 = vmatprep.subr.mxu0 0.0
    %549 = vmatpush1.msra.mxu0 0.0
    %550 = vmatprep.subr.mxu0 0.0
    %551 = vmatpush1.msra.mxu0 0.0
    %552 = vmatprep.subr.mxu0 0.0
    %553 = vmatpush1.msra.mxu0 0.0
    %554 = vmatprep.mubr.f32.mxu0 0.0
    %555 = vmatmul.mubr.f32.gmra.mrb[0].mxu0 %v348
    %v556 = vpop.f32.mrb[0].mxu0
    %v557 = vadd.f32 0.0, %v556
    %v558 = vpop.f32.mrb[0].mxu0
    %559 = vmatprep.mubr.f32.mxu0 0.0
    %560 = vmatmul.mubr.f32.gmra.mrb[0].mxu0 %v351
    %v561 = vpop.f32.mrb[0].mxu0
    %v562 = vadd.f32 0.0, %v561
    %v563 = vpop.f32.mrb[0].mxu0
    %564 = vmatprep.mubr.f32.mxu0 0.0
    %565 = vmatmul.mubr.f32.gmra.mrb[0].mxu0 %v354
    %v566 = vpop.f32.mrb[0].mxu0
    %v567 = vadd.f32 0.0, %v566
    %v568 = vpop.f32.mrb[0].mxu0
    %569 = vmatprep.mubr.f32.mxu0 0.0
    %570 = vmatmul.mubr.f32.gmra.mrb[0].mxu0 %v357
    %v571 = vpop.f32.mrb[0].mxu0
    %v572 = vadd.f32 0.0, %v571
    %v573 = vpop.f32.mrb[0].mxu0
    %574 = vmatprep.mubr.f32.mxu0 0.0
    %575 = vmatmul.mubr.f32.gmra.mrb[0].mxu0 %v360
    %v576 = vpop.f32.mrb[0].mxu0
    %v577 = vadd.f32 0.0, %v576
    %v578 = vpop.f32.mrb[0].mxu0
    %579 = vmatprep.mubr.f32.mxu0 0.0
    %580 = vmatmul.mubr.f32.gmra.mrb[0].mxu0 %v363
    %v581 = vpop.f32.mrb[0].mxu0
    %v582 = vadd.f32 0.0, %v581
    %v583 = vpop.f32.mrb[0].mxu0
    %584 = vmatprep.mubr.f32.mxu0 0.0
    %585 = vmatmul.mubr.f32.gmra.mrb[0].mxu0 %v366
    %v586 = vpop.f32.mrb[0].mxu0
    %v587 = vadd.f32 0.0, %v586
    %v588 = vpop.f32.mrb[0].mxu0
    %589 = vmatprep.mubr.f32.mxu0 0.0
    %590 = vmatmul.mubr.f32.gmra.mrb[0].mxu0 %v369
    %v591 = vpop.f32.mrb[0].mxu0
    %v592 = vadd.f32 0.0, %v591
    %v593 = vpop.f32.mrb[0].mxu0
    %594 = vdwg.mxu0
    %v595 = vmul.f32 %v557, %v322
    %v596 = vmul.f32 %v562, %v323
    %v597 = vmul.f32 %v567, %v324
    %v598 = vmul.f32 %v572, %v325
    %v599 = vmul.f32 %v577, %v326
    %v600 = vmul.f32 %v582, %v327
    %v601 = vmul.f32 %v587, %v328
    %v602 = vmul.f32 %v592, %v329
    %v603 = vld [vmem:[%s1] sm:$0xff]
    %v604 = vld [vmem:[%s1 + $0x8] sm:$0xff]
    %v605 = vsel %vm192, %v314, 0
    %v607 = vsel %vm192, %v319, 0
    %v610 = vsel %vm192, %v476, 0
    %v613 = vsel %vm192, %v477, 0
    %v616 = vsel %vm192, %v478, 0
    %v619 = vsel %vm192, %v479, 0
    %v622 = vsel %vm192, %v480, 0
    %v625 = vsel %vm192, %v481, 0
    %v628 = vsel %vm192, %v482, 0
    %v631 = vsel %vm192, %v483, 0
    %633 = vmatprep.subr.mxu0 0.0
    %634 = vmatpush1.xpose.msra.mxu0 %v610
    %635 = vmatprep.subr.mxu0 0.0
    %636 = vmatpush1.xpose.msra.mxu0 %v613
    %637 = vmatprep.subr.mxu0 0.0
    %638 = vmatpush1.xpose.msra.mxu0 %v616
    %639 = vmatprep.subr.mxu0 0.0
    %640 = vmatpush1.xpose.msra.mxu0 %v619
    %641 = vmatprep.subr.mxu0 0.0
    %642 = vmatpush1.xpose.msra.mxu0 %v622
    %643 = vmatprep.subr.mxu0 0.0
    %644 = vmatpush1.xpose.msra.mxu0 %v625
    %645 = vmatprep.subr.mxu0 0.0
    %646 = vmatpush1.xpose.msra.mxu0 %v628
    %647 = vmatprep.subr.mxu0 0.0
    %648 = vmatpush1.xpose.msra.mxu0 %v631
    %649 = vmatprep.subr.mxu0 0.0
    %650 = vmatpush1.xpose.msra.mxu0 0.0
    %651 = vmatprep.subr.mxu0 0.0
    %652 = vmatpush1.xpose.msra.mxu0 0.0
    %653 = vmatprep.subr.mxu0 0.0
    %654 = vmatpush1.xpose.msra.mxu0 0.0
    %655 = vmatprep.subr.mxu0 0.0
    %656 = vmatpush1.xpose.msra.mxu0 0.0
    %657 = vmatprep.subr.mxu0 0.0
    %658 = vmatpush1.xpose.msra.mxu0 0.0
    %659 = vmatprep.subr.mxu0 0.0
    %660 = vmatpush1.xpose.msra.mxu0 0.0
    %661 = vmatprep.subr.mxu0 0.0
    %662 = vmatpush1.xpose.msra.mxu0 0.0
    %663 = vmatprep.subr.mxu0 0.0
    %664 = vmatpush1.xpose.msra.mxu0 0.0
    %665 = vmatprep.subr.mxu0 0.0
    %666 = vmatpush1.xpose.msra.mxu0 0.0
    %667 = vmatprep.subr.mxu0 0.0
    %668 = vmatpush1.xpose.msra.mxu0 0.0
    %669 = vmatprep.subr.mxu0 0.0
    %670 = vmatpush1.xpose.msra.mxu0 0.0
    %671 = vmatprep.subr.mxu0 0.0
    %672 = vmatpush1.xpose.msra.mxu0 0.0
    %673 = vmatprep.subr.mxu0 0.0
    %674 = vmatpush1.xpose.msra.mxu0 0.0
    %675 = vmatprep.subr.mxu0 0.0
    %676 = vmatpush1.xpose.msra.mxu0 0.0
    %677 = vmatprep.subr.mxu0 0.0
    %678 = vmatpush1.xpose.msra.mxu0 0.0
    %679 = vmatprep.subr.mxu0 0.0
    %680 = vmatpush1.xpose.msra.mxu0 0.0
    %681 = vmatprep.subr.mxu0 0.0
    %682 = vmatpush1.xpose.msra.mxu0 0.0
    %683 = vmatprep.subr.mxu0 0.0
    %684 = vmatpush1.xpose.msra.mxu0 0.0
    %685 = vmatprep.subr.mxu0 0.0
    %686 = vmatpush1.xpose.msra.mxu0 0.0
    %687 = vmatprep.subr.mxu0 0.0
    %688 = vmatpush1.xpose.msra.mxu0 0.0
    %689 = vmatprep.subr.mxu0 0.0
    %690 = vmatpush1.xpose.msra.mxu0 0.0
    %691 = vmatprep.subr.mxu0 0.0
    %692 = vmatpush1.xpose.msra.mxu0 0.0
    %693 = vmatprep.subr.mxu0 0.0
    %694 = vmatpush1.xpose.msra.mxu0 0.0
    %695 = vmatprep.subr.mxu0 0.0
    %696 = vmatpush1.xpose.msra.mxu0 0.0
    %697 = vmatprep.mubr.f32.mxu0 0.0
    %698 = vmatmul.mubr.f32.gmra.mrb[0].mxu0 %v605
    %v699 = vpop.f32.mrb[0].mxu0
    %v700 = vadd.f32 %v603, %v699
    %v701 = vpop.f32.mrb[0].mxu0
    %702 = vmatprep.mubr.f32.mxu0 0.0
    %703 = vmatmul.mubr.f32.gmra.mrb[0].mxu0 %v607
    %v704 = vpop.f32.mrb[0].mxu0
    %v705 = vadd.f32 %v604, %v704
    %v706 = vpop.f32.mrb[0].mxu0
    %707 = vdwg.mxu0
    %vm708 = vcmask 523264
    %v709 = vsel %vm708, %v700, -inf
    %710 = vmax.xlane.f32.xlu0 %v709
    %v711 = vpop.xlane.xlu0 %710
    %v712 = vsel %vm708, %v705, -inf
    %713 = vmax.xlane.f32.xlu0 %v712
    %v714 = vpop.xlane.xlu0 %713
    %v715 = vsub.f32 %v700, %v711
    %v716 = vsub.f32 %v705, %v714
    %v717 = vmul.f32 %v715, 1.442695
    %v718 = vpow.pop %v717
    %v719 = vmul.f32 %v716, 1.442695
    %v720 = vpow.pop %v719
    %v721 = vld [vmem:[#allocation6] sm:$0xff]
    %v722 = vld [vmem:[#allocation6 + $0x8] sm:$0xff]
    %v723 = vld [vmem:[#allocation6 + $0x10] sm:$0xff]
    %v724 = vld [vmem:[#allocation6 + $0x18] sm:$0xff]
    %v725 = vld [vmem:[#allocation6 + $0x20] sm:$0xff]
    %v726 = vld [vmem:[#allocation6 + $0x28] sm:$0xff]
    %v727 = vld [vmem:[#allocation6 + $0x30] sm:$0xff]
    %v728 = vld [vmem:[#allocation6 + $0x38] sm:$0xff]
    %v730 = vsel %vm708, %v718, 0
    %v733 = vsel %vm708, %v720, 0
    %735 = vmatprep.subr.mxu0 0.0
    %736 = vmatpush1.msra.mxu0 %v721
    %737 = vmatprep.subr.mxu0 0.0
    %738 = vmatpush1.msra.mxu0 %v722
    %739 = vmatprep.subr.mxu0 0.0
    %740 = vmatpush1.msra.mxu0 %v723
    %741 = vmatprep.subr.mxu0 0.0
    %742 = vmatpush1.msra.mxu0 %v724
    %743 = vmatprep.subr.mxu0 0.0
    %744 = vmatpush1.msra.mxu0 %v725
    %745 = vmatprep.subr.mxu0 0.0
    %746 = vmatpush1.msra.mxu0 %v726
    %747 = vmatprep.subr.mxu0 0.0
    %748 = vmatpush1.msra.mxu0 %v727
    %749 = vmatprep.subr.mxu0 0.0
    %750 = vmatpush1.msra.mxu0 %v728
    %751 = vmatprep.subr.mxu0 0.0
    %752 = vmatpush1.msra.mxu0 0.0
    %753 = vmatprep.subr.mxu0 0.0
    %754 = vmatpush1.msra.mxu0 0.0
    %755 = vmatprep.subr.mxu0 0.0
    %756 = vmatpush1.msra.mxu0 0.0
    %757 = vmatprep.subr.mxu0 0.0
    %758 = vmatpush1.msra.mxu0 0.0
    %759 = vmatprep.subr.mxu0 0.0
    %760 = vmatpush1.msra.mxu0 0.0
    %761 = vmatprep.subr.mxu0 0.0
    %762 = vmatpush1.msra.mxu0 0.0
    %763 = vmatprep.subr.mxu0 0.0
    %764 = vmatpush1.msra.mxu0 0.0
    %765 = vmatprep.subr.mxu0 0.0
    %766 = vmatpush1.msra.mxu0 0.0
    %767 = vmatprep.subr.mxu0 0.0
    %768 = vmatpush1.msra.mxu0 0.0
    %769 = vmatprep.subr.mxu0 0.0
    %770 = vmatpush1.msra.mxu0 0.0
    %771 = vmatprep.subr.mxu0 0.0
    %772 = vmatpush1.msra.mxu0 0.0
    %773 = vmatprep.subr.mxu0 0.0
    %774 = vmatpush1.msra.mxu0 0.0
    %775 = vmatprep.subr.mxu0 0.0
    %776 = vmatpush1.msra.mxu0 0.0
    %777 = vmatprep.subr.mxu0 0.0
    %778 = vmatpush1.msra.mxu0 0.0
    %779 = vmatprep.subr.mxu0 0.0
    %780 = vmatpush1.msra.mxu0 0.0
    %781 = vmatprep.subr.mxu0 0.0
    %782 = vmatpush1.msra.mxu0 0.0
    %783 = vmatprep.subr.mxu0 0.0
    %784 = vmatpush1.msra.mxu0 0.0
    %785 = vmatprep.subr.mxu0 0.0
    %786 = vmatpush1.msra.mxu0 0.0
    %787 = vmatprep.subr.mxu0 0.0
    %788 = vmatpush1.msra.mxu0 0.0
    %789 = vmatprep.subr.mxu0 0.0
    %790 = vmatpush1.msra.mxu0 0.0
    %791 = vmatprep.subr.mxu0 0.0
    %792 = vmatpush1.msra.mxu0 0.0
    %793 = vmatprep.subr.mxu0 0.0
    %794 = vmatpush1.msra.mxu0 0.0
    %795 = vmatprep.subr.mxu0 0.0
    %796 = vmatpush1.msra.mxu0 0.0
    %797 = vmatprep.subr.mxu0 0.0
    %798 = vmatpush1.msra.mxu0 0.0
    %799 = vmatprep.mubr.f32.mxu0 0.0
    %800 = vmatmul.mubr.f32.gmra.mrb[0].mxu0 %v730
    %v801 = vpop.f32.mrb[0].mxu0
    %v802 = vadd.f32 1e-30, %v801
    %v803 = vpop.f32.mrb[0].mxu0
    %804 = vmatprep.mubr.f32.mxu0 0.0
    %805 = vmatmul.mubr.f32.gmra.mrb[0].mxu0 %v733
    %v806 = vpop.f32.mrb[0].mxu0
    %v807 = vadd.f32 1e-30, %v806
    %v808 = vpop.f32.mrb[0].mxu0
    %809 = vdwg.mxu0
    %v810 = vrcp.pop %v802
    %v811 = vmul.f32 %v718, %v810
    %v812 = vrcp.pop %v807
    %v813 = vmul.f32 %v720, %v812
    %v815 = vsel %vm708, %v811, 0
    %v818 = vsel %vm708, %v813, 0
    %820 = vmatprep.subr.mxu0 0.0
    %821 = vmatpush1.msra.mxu0 %v595
    %822 = vmatprep.subr.mxu0 0.0
    %823 = vmatpush1.msra.mxu0 %v596
    %824 = vmatprep.subr.mxu0 0.0
    %825 = vmatpush1.msra.mxu0 %v597
    %826 = vmatprep.subr.mxu0 0.0
    %827 = vmatpush1.msra.mxu0 %v598
    %828 = vmatprep.subr.mxu0 0.0
    %829 = vmatpush1.msra.mxu0 %v599
    %830 = vmatprep.subr.mxu0 0.0
    %831 = vmatpush1.msra.mxu0 %v600
    %832 = vmatprep.subr.mxu0 0.0
    %833 = vmatpush1.msra.mxu0 %v601
    %834 = vmatprep.subr.mxu0 0.0
    %835 = vmatpush1.msra.mxu0 %v602
    %836 = vmatprep.subr.mxu0 0.0
    %837 = vmatpush1.msra.mxu0 0.0
    %838 = vmatprep.subr.mxu0 0.0
    %839 = vmatpush1.msra.mxu0 0.0
    %840 = vmatprep.subr.mxu0 0.0
    %841 = vmatpush1.msra.mxu0 0.0
    %842 = vmatprep.subr.mxu0 0.0
    %843 = vmatpush1.msra.mxu0 0.0
    %844 = vmatprep.subr.mxu0 0.0
    %845 = vmatpush1.msra.mxu0 0.0
    %846 = vmatprep.subr.mxu0 0.0
    %847 = vmatpush1.msra.mxu0 0.0
    %848 = vmatprep.subr.mxu0 0.0
    %849 = vmatpush1.msra.mxu0 0.0
    %850 = vmatprep.subr.mxu0 0.0
    %851 = vmatpush1.msra.mxu0 0.0
    %852 = vmatprep.subr.mxu0 0.0
    %853 = vmatpush1.msra.mxu0 0.0
    %854 = vmatprep.subr.mxu0 0.0
    %855 = vmatpush1.msra.mxu0 0.0
    %856 = vmatprep.subr.mxu0 0.0
    %857 = vmatpush1.msra.mxu0 0.0
    %858 = vmatprep.subr.mxu0 0.0
    %859 = vmatpush1.msra.mxu0 0.0
    %860 = vmatprep.subr.mxu0 0.0
    %861 = vmatpush1.msra.mxu0 0.0
    %862 = vmatprep.subr.mxu0 0.0
    %863 = vmatpush1.msra.mxu0 0.0
    %864 = vmatprep.subr.mxu0 0.0
    %865 = vmatpush1.msra.mxu0 0.0
    %866 = vmatprep.subr.mxu0 0.0
    %867 = vmatpush1.msra.mxu0 0.0
    %868 = vmatprep.subr.mxu0 0.0
    %869 = vmatpush1.msra.mxu0 0.0
    %870 = vmatprep.subr.mxu0 0.0
    %871 = vmatpush1.msra.mxu0 0.0
    %872 = vmatprep.subr.mxu0 0.0
    %873 = vmatpush1.msra.mxu0 0.0
    %874 = vmatprep.subr.mxu0 0.0
    %875 = vmatpush1.msra.mxu0 0.0
    %876 = vmatprep.subr.mxu0 0.0
    %877 = vmatpush1.msra.mxu0 0.0
    %878 = vmatprep.subr.mxu0 0.0
    %879 = vmatpush1.msra.mxu0 0.0
    %880 = vmatprep.subr.mxu0 0.0
    %881 = vmatpush1.msra.mxu0 0.0
    %882 = vmatprep.subr.mxu0 0.0
    %883 = vmatpush1.msra.mxu0 0.0
    %884 = vmatprep.mubr.f32.mxu0 0.0
    %885 = vmatmul.mubr.f32.gmra.mrb[0].mxu0 %v815
    %v886 = vpop.f32.mrb[0].mxu0
    %v887 = vadd.f32 0.0, %v886
    %v888 = vpop.f32.mrb[0].mxu0
    %889 = vmatprep.mubr.f32.mxu0 0.0
    %890 = vmatmul.mubr.f32.gmra.mrb[0].mxu0 %v818
    %v891 = vpop.f32.mrb[0].mxu0
    %v892 = vadd.f32 0.0, %v891
    %v893 = vpop.f32.mrb[0].mxu0
    %894 = vdwg.mxu0
    %v895 = vld [vmem:[#allocation4 + $0xd0] sm:$0xff]
    %v896 = vld [vmem:[#allocation4 + $0xd8] sm:$0xff]
    %v897 = vld [vmem:[#allocation4 + $0xe0] sm:$0xff]
    %v898 = vld [vmem:[#allocation4 + $0xe8] sm:$0xff]
    %v899 = vld [vmem:[%s6 + $0x7] sm:$0x1]
    %v900 = vlaneseq
    %v901 = vshrl.u32 %v900, 7
    %v902 = vsub.s32 0, %v901
    %v903 = vrot.slane %v899, %v902
    %v905 = vsel %vm192, %v887, 0
    %v908 = vsel %vm192, %v892, 0
    %910 = vmatprep.subr.mxu0 0.0
    %911 = vmatpush1.msra.mxu0 %v895
    %912 = vmatprep.subr.mxu0 0.0
    %913 = vmatpush1.msra.mxu0 %v896
    %914 = vmatprep.subr.mxu0 0.0
    %915 = vmatpush1.msra.mxu0 %v897
    %916 = vmatprep.subr.mxu0 0.0
    %917 = vmatpush1.msra.mxu0 %v898
    %918 = vmatprep.subr.mxu0 0.0
    %919 = vmatpush1.msra.mxu0 0.0
    %920 = vmatprep.subr.mxu0 0.0
    %921 = vmatpush1.msra.mxu0 0.0
    %922 = vmatprep.subr.mxu0 0.0
    %923 = vmatpush1.msra.mxu0 0.0
    %924 = vmatprep.subr.mxu0 0.0
    %925 = vmatpush1.msra.mxu0 0.0
    %926 = vmatprep.subr.mxu0 0.0
    %927 = vmatpush1.msra.mxu0 0.0
    %928 = vmatprep.subr.mxu0 0.0
    %929 = vmatpush1.msra.mxu0 0.0
    %930 = vmatprep.subr.mxu0 0.0
    %931 = vmatpush1.msra.mxu0 0.0
    %932 = vmatprep.subr.mxu0 0.0
    %933 = vmatpush1.msra.mxu0 0.0
    %934 = vmatprep.subr.mxu0 0.0
    %935 = vmatpush1.msra.mxu0 0.0
    %936 = vmatprep.subr.mxu0 0.0
    %937 = vmatpush1.msra.mxu0 0.0
    %938 = vmatprep.subr.mxu0 0.0
    %939 = vmatpush1.msra.mxu0 0.0
    %940 = vmatprep.subr.mxu0 0.0
    %941 = vmatpush1.msra.mxu0 0.0
    %942 = vmatprep.subr.mxu0 0.0
    %943 = vmatpush1.msra.mxu0 0.0
    %944 = vmatprep.subr.mxu0 0.0
    %945 = vmatpush1.msra.mxu0 0.0
    %946 = vmatprep.subr.mxu0 0.0
    %947 = vmatpush1.msra.mxu0 0.0
    %948 = vmatprep.subr.mxu0 0.0
    %949 = vmatpush1.msra.mxu0 0.0
    %950 = vmatprep.subr.mxu0 0.0
    %951 = vmatpush1.msra.mxu0 0.0
    %952 = vmatprep.subr.mxu0 0.0
    %953 = vmatpush1.msra.mxu0 0.0
    %954 = vmatprep.subr.mxu0 0.0
    %955 = vmatpush1.msra.mxu0 0.0
    %956 = vmatprep.subr.mxu0 0.0
    %957 = vmatpush1.msra.mxu0 0.0
    %958 = vmatprep.subr.mxu0 0.0
    %959 = vmatpush1.msra.mxu0 0.0
    %960 = vmatprep.subr.mxu0 0.0
    %961 = vmatpush1.msra.mxu0 0.0
    %962 = vmatprep.subr.mxu0 0.0
    %963 = vmatpush1.msra.mxu0 0.0
    %964 = vmatprep.subr.mxu0 0.0
    %965 = vmatpush1.msra.mxu0 0.0
    %966 = vmatprep.subr.mxu0 0.0
    %967 = vmatpush1.msra.mxu0 0.0
    %968 = vmatprep.subr.mxu0 0.0
    %969 = vmatpush1.msra.mxu0 0.0
    %970 = vmatprep.subr.mxu0 0.0
    %971 = vmatpush1.msra.mxu0 0.0
    %972 = vmatprep.subr.mxu0 0.0
    %973 = vmatpush1.msra.mxu0 0.0
    %974 = vmatprep.mubr.f32.mxu0 0.0
    %975 = vmatmul.mubr.f32.gmra.mrb[0].mxu0 %v905
    %v976 = vpop.f32.mrb[0].mxu0
    %v977 = vadd.f32 %v903, %v976
    %v978 = vpop.f32.mrb[0].mxu0
    %979 = vmatprep.mubr.f32.mxu0 0.0
    %980 = vmatmul.mubr.f32.gmra.mrb[0].mxu0 %v908
    %v981 = vpop.f32.mrb[0].mxu0
    %v982 = vadd.f32 %v903, %v981
    %v983 = vpop.f32.mrb[0].mxu0
    %984 = vdwg.mxu0
    %v985 = vadd.f32 %v230, %v977
    %v986 = vadd.f32 %v231, %v982
    %v987 = vld [vmem:[%s6 + $0x2] sm:$0x1]
    %v988 = vld [vmem:[%s6 + $0x3] sm:$0x1]
    %v989 = vsel %vm192, %v985, 0.0
    %990 = vadd.xlane.f32.xlu0 %v989
    %v991 = vpop.xlane.xlu0 %990
    %v992 = vsel %vm192, %v986, 0.0
    %993 = vadd.xlane.f32.xlu0 %v992
    %v994 = vpop.xlane.xlu0 %993
    %v995 = vmul.f32 %v991, %v199
    %v996 = vmul.f32 %v994, %v199
    %v997 = vsub.f32 %v985, %v995
    %v998 = vsub.f32 %v986, %v996
    %v999 = vmul.f32 %v997, %v997
    %v1000 = vmul.f32 %v998, %v998
    %v1001 = vsel %vm192, %v999, 0.0
    %1002 = vadd.xlane.f32.xlu0 %v1001
    %v1003 = vpop.xlane.xlu0 %1002
    %v1004 = vsel %vm192, %v1000, 0.0
    %1005 = vadd.xlane.f32.xlu0 %v1004
    %v1006 = vpop.xlane.xlu0 %1005
    %v1007 = vmul.f32 %v1003, %v199
    %v1008 = vmul.f32 %v1006, %v199
    %v1009 = vadd.f32 %v1007, 1e-12
    %v1010 = vadd.f32 %v1008, 1e-12
    %v1011 = vrsqrt.pop %v1009
    %v1012 = vrsqrt.pop %v1010
    %v1013 = vmul.f32 %v997, %v1011
    %v1014 = vmul.f32 %v998, %v1012
    %v1015 = vlaneseq
    %v1016 = vshrl.u32 %v1015, 7
    %v1017 = vsub.s32 0, %v1016
    %v1018 = vrot.slane %v987, %v1017
    %v1019 = vmul.f32 %v1013, %v1018
    %v1020 = vmul.f32 %v1014, %v1018
    %v1021 = vlaneseq
    %v1022 = vshrl.u32 %v1021, 7
    %v1023 = vsub.s32 0, %v1022
    %v1024 = vrot.slane %v988, %v1023
    %v1025 = vadd.f32 %v1019, %v1024
    %v1026 = vadd.f32 %v1020, %v1024
    %v1027 = vld [vmem:[#allocation6 + $0x40] sm:$0xff]
    %v1028 = vld [vmem:[#allocation6 + $0x48] sm:$0xff]
    %v1029 = vld [vmem:[#allocation6 + $0x50] sm:$0xff]
    %v1030 = vld [vmem:[#allocation6 + $0x58] sm:$0xff]
    %v1031 = vld [vmem:[%s6 + $0x8] sm:$0x1]
    %v1032 = vlaneseq
    %v1033 = vshrl.u32 %v1032, 7
    %v1034 = vsub.s32 0, %v1033
    %v1035 = vrot.slane %v1031, %v1034
    %v1037 = vsel %vm192, %v1025, 0
    %v1040 = vsel %vm192, %v1026, 0
    %1042 = vmatprep.subr.mxu0 0.0
    %1043 = vmatpush1.msra.mxu0 %v1027
    %1044 = vmatprep.subr.mxu0 0.0
    %1045 = vmatpush1.msra.mxu0 %v1028
    %1046 = vmatprep.subr.mxu0 0.0
    %1047 = vmatpush1.msra.mxu0 %v1029
    %1048 = vmatprep.subr.mxu0 0.0
    %1049 = vmatpush1.msra.mxu0 %v1030
    %1050 = vmatprep.subr.mxu0 0.0
    %1051 = vmatpush1.msra.mxu0 0.0
    %1052 = vmatprep.subr.mxu0 0.0
    %1053 = vmatpush1.msra.mxu0 0.0
    %1054 = vmatprep.subr.mxu0 0.0
    %1055 = vmatpush1.msra.mxu0 0.0
    %1056 = vmatprep.subr.mxu0 0.0
    %1057 = vmatpush1.msra.mxu0 0.0
    %1058 = vmatprep.subr.mxu0 0.0
    %1059 = vmatpush1.msra.mxu0 0.0
    %1060 = vmatprep.subr.mxu0 0.0
    %1061 = vmatpush1.msra.mxu0 0.0
    %1062 = vmatprep.subr.mxu0 0.0
    %1063 = vmatpush1.msra.mxu0 0.0
    %1064 = vmatprep.subr.mxu0 0.0
    %1065 = vmatpush1.msra.mxu0 0.0
    %1066 = vmatprep.subr.mxu0 0.0
    %1067 = vmatpush1.msra.mxu0 0.0
    %1068 = vmatprep.subr.mxu0 0.0
    %1069 = vmatpush1.msra.mxu0 0.0
    %1070 = vmatprep.subr.mxu0 0.0
    %1071 = vmatpush1.msra.mxu0 0.0
    %1072 = vmatprep.subr.mxu0 0.0
    %1073 = vmatpush1.msra.mxu0 0.0
    %1074 = vmatprep.subr.mxu0 0.0
    %1075 = vmatpush1.msra.mxu0 0.0
    %1076 = vmatprep.subr.mxu0 0.0
    %1077 = vmatpush1.msra.mxu0 0.0
    %1078 = vmatprep.subr.mxu0 0.0
    %1079 = vmatpush1.msra.mxu0 0.0
    %1080 = vmatprep.subr.mxu0 0.0
    %1081 = vmatpush1.msra.mxu0 0.0
    %1082 = vmatprep.subr.mxu0 0.0
    %1083 = vmatpush1.msra.mxu0 0.0
    %1084 = vmatprep.subr.mxu0 0.0
    %1085 = vmatpush1.msra.mxu0 0.0
    %1086 = vmatprep.subr.mxu0 0.0
    %1087 = vmatpush1.msra.mxu0 0.0
    %1088 = vmatprep.subr.mxu0 0.0
    %1089 = vmatpush1.msra.mxu0 0.0
    %1090 = vmatprep.subr.mxu0 0.0
    %1091 = vmatpush1.msra.mxu0 0.0
    %1092 = vmatprep.subr.mxu0 0.0
    %1093 = vmatpush1.msra.mxu0 0.0
    %1094 = vmatprep.subr.mxu0 0.0
    %1095 = vmatpush1.msra.mxu0 0.0
    %1096 = vmatprep.subr.mxu0 0.0
    %1097 = vmatpush1.msra.mxu0 0.0
    %1098 = vmatprep.subr.mxu0 0.0
    %1099 = vmatpush1.msra.mxu0 0.0
    %1100 = vmatprep.subr.mxu0 0.0
    %1101 = vmatpush1.msra.mxu0 0.0
    %1102 = vmatprep.subr.mxu0 0.0
    %1103 = vmatpush1.msra.mxu0 0.0
    %1104 = vmatprep.subr.mxu0 0.0
    %1105 = vmatpush1.msra.mxu0 0.0
    %1106 = vmatprep.mubr.f32.mxu0 0.0
    %1107 = vmatmul.mubr.f32.gmra.mrb[0].mxu0 %v1037
    %v1108 = vpop.f32.mrb[0].mxu0
    %v1109 = vadd.f32 %v1035, %v1108
    %v1110 = vpop.f32.mrb[0].mxu0
    %1111 = vmatprep.mubr.f32.mxu0 0.0
    %1112 = vmatmul.mubr.f32.gmra.mrb[0].mxu0 %v1040
    %v1113 = vpop.f32.mrb[0].mxu0
    %v1114 = vadd.f32 %v1035, %v1113
    %v1115 = vpop.f32.mrb[0].mxu0
    %1116 = vdwg.mxu0
    %v1117 = vmul.f32 %v1109, %v1109
    %v1118 = vmul.f32 %v1114, %v1114
    %v1119 = vmul.f32 %v1109, %v1117
    %v1120 = vmul.f32 %v1114, %v1118
    %v1121 = vmul.f32 %v1119, 0.044715
    %v1122 = vmul.f32 %v1120, 0.044715
    %v1123 = vadd.f32 %v1109, %v1121
    %v1124 = vadd.f32 %v1114, %v1122
    %v1125 = vmul.f32 %v1123, 0.7978846
    %v1126 = vmul.f32 %v1124, 0.7978846
    %v1127 = vtanh.pop %v1125
    %v1128 = vtanh.pop %v1126
    %v1129 = vadd.f32 %v1127, 1.0
    %v1130 = vadd.f32 %v1128, 1.0
    %v1131 = vmul.f32 %v1129, 0.5
    %v1132 = vmul.f32 %v1130, 0.5
    %v1133 = vmul.f32 %v1109, %v1131
    %v1134 = vmul.f32 %v1114, %v1132
    %v1135 = vld [vmem:[#allocation4 + $0xf0] sm:$0xff]
    %v1136 = vld [vmem:[#allocation4 + $0xf8] sm:$0xff]
    %v1137 = vld [vmem:[#allocation4 + $0x100] sm:$0xff]
    %v1138 = vld [vmem:[#allocation4 + $0x108] sm:$0xff]
    %v1139 = vld [vmem:[#allocation4 + $0x110] sm:$0xff]
    %v1140 = vld [vmem:[#allocation4 + $0x118] sm:$0xff]
    %v1141 = vld [vmem:[#allocation4 + $0x120] sm:$0xff]
    %v1142 = vld [vmem:[#allocation4 + $0x128] sm:$0xff]
    %v1143 = vld [vmem:[%s6 + $0x9] sm:$0x1]
    %v1144 = vlaneseq
    %v1145 = vshrl.u32 %v1144, 7
    %v1146 = vsub.s32 0, %v1145
    %v1147 = vrot.slane %v1143, %v1146
    %v1149 = vsel %vm708, %v1133, 0
    %v1152 = vsel %vm708, %v1134, 0
    %1154 = vmatprep.subr.mxu0 0.0
    %1155 = vmatpush1.msra.mxu0 %v1135
    %1156 = vmatprep.subr.mxu0 0.0
    %1157 = vmatpush1.msra.mxu0 %v1136
    %1158 = vmatprep.subr.mxu0 0.0
    %1159 = vmatpush1.msra.mxu0 %v1137
    %1160 = vmatprep.subr.mxu0 0.0
    %1161 = vmatpush1.msra.mxu0 %v1138
    %1162 = vmatprep.subr.mxu0 0.0
    %1163 = vmatpush1.msra.mxu0 %v1139
    %1164 = vmatprep.subr.mxu0 0.0
    %1165 = vmatpush1.msra.mxu0 %v1140
    %1166 = vmatprep.subr.mxu0 0.0
    %1167 = vmatpush1.msra.mxu0 %v1141
    %1168 = vmatprep.subr.mxu0 0.0
    %1169 = vmatpush1.msra.mxu0 %v1142
    %1170 = vmatprep.subr.mxu0 0.0
    %1171 = vmatpush1.msra.mxu0 0.0
    %1172 = vmatprep.subr.mxu0 0.0
    %1173 = vmatpush1.msra.mxu0 0.0
    %1174 = vmatprep.subr.mxu0 0.0
    %1175 = vmatpush1.msra.mxu0 0.0
    %1176 = vmatprep.subr.mxu0 0.0
    %1177 = vmatpush1.msra.mxu0 0.0
    %1178 = vmatprep.subr.mxu0 0.0
    %1179 = vmatpush1.msra.mxu0 0.0
    %1180 = vmatprep.subr.mxu0 0.0
    %1181 = vmatpush1.msra.mxu0 0.0
    %1182 = vmatprep.subr.mxu0 0.0
    %1183 = vmatpush1.msra.mxu0 0.0
    %1184 = vmatprep.subr.mxu0 0.0
    %1185 = vmatpush1.msra.mxu0 0.0
    %1186 = vmatprep.subr.mxu0 0.0
    %1187 = vmatpush1.msra.mxu0 0.0
    %1188 = vmatprep.subr.mxu0 0.0
    %1189 = vmatpush1.msra.mxu0 0.0
    %1190 = vmatprep.subr.mxu0 0.0
    %1191 = vmatpush1.msra.mxu0 0.0
    %1192 = vmatprep.subr.mxu0 0.0
    %1193 = vmatpush1.msra.mxu0 0.0
    %1194 = vmatprep.subr.mxu0 0.0
    %1195 = vmatpush1.msra.mxu0 0.0
    %1196 = vmatprep.subr.mxu0 0.0
    %1197 = vmatpush1.msra.mxu0 0.0
    %1198 = vmatprep.subr.mxu0 0.0
    %1199 = vmatpush1.msra.mxu0 0.0
    %1200 = vmatprep.subr.mxu0 0.0
    %1201 = vmatpush1.msra.mxu0 0.0
    %1202 = vmatprep.subr.mxu0 0.0
    %1203 = vmatpush1.msra.mxu0 0.0
    %1204 = vmatprep.subr.mxu0 0.0
    %1205 = vmatpush1.msra.mxu0 0.0
    %1206 = vmatprep.subr.mxu0 0.0
    %1207 = vmatpush1.msra.mxu0 0.0
    %1208 = vmatprep.subr.mxu0 0.0
    %1209 = vmatpush1.msra.mxu0 0.0
    %1210 = vmatprep.subr.mxu0 0.0
    %1211 = vmatpush1.msra.mxu0 0.0
    %1212 = vmatprep.subr.mxu0 0.0
    %1213 = vmatpush1.msra.mxu0 0.0
    %1214 = vmatprep.subr.mxu0 0.0
    %1215 = vmatpush1.msra.mxu0 0.0
    %1216 = vmatprep.subr.mxu0 0.0
    %1217 = vmatpush1.msra.mxu0 0.0
    %1218 = vmatprep.mubr.f32.mxu0 0.0
    %1219 = vmatmul.mubr.f32.gmra.mrb[0].mxu0 %v1149
    %v1220 = vpop.f32.mrb[0].mxu0
    %v1221 = vadd.f32 %v1147, %v1220
    %v1222 = vpop.f32.mrb[0].mxu0
    %1223 = vmatprep.mubr.f32.mxu0 0.0
    %1224 = vmatmul.mubr.f32.gmra.mrb[0].mxu0 %v1152
    %v1225 = vpop.f32.mrb[0].mxu0
    %v1226 = vadd.f32 %v1147, %v1225
    %v1227 = vpop.f32.mrb[0].mxu0
    %1228 = vdwg.mxu0
    %v1229 = vadd.f32 %v1025, %v1221
    %v1230 = vadd.f32 %v1026, %v1226
    %v1231 = vld [vmem:[%s6 + $0x4] sm:$0x1]
    %v1232 = vld [vmem:[%s6 + $0x5] sm:$0x1]
    %v1233 = vsel %vm192, %v1229, 0.0
    %1234 = vadd.xlane.f32.xlu0 %v1233
    %v1235 = vpop.xlane.xlu0 %1234
    %v1236 = vsel %vm192, %v1230, 0.0
    %1237 = vadd.xlane.f32.xlu0 %v1236
    %v1238 = vpop.xlane.xlu0 %1237
    %v1239 = vmul.f32 %v1235, %v199
    %v1240 = vmul.f32 %v1238, %v199
    %v1241 = vsub.f32 %v1229, %v1239
    %v1242 = vsub.f32 %v1230, %v1240
    %v1243 = vmul.f32 %v1241, %v1241
    %v1244 = vmul.f32 %v1242, %v1242
    %v1245 = vsel %vm192, %v1243, 0.0
    %1246 = vadd.xlane.f32.xlu0 %v1245
    %v1247 = vpop.xlane.xlu0 %1246
    %v1248 = vsel %vm192, %v1244, 0.0
    %1249 = vadd.xlane.f32.xlu0 %v1248
    %v1250 = vpop.xlane.xlu0 %1249
    %v1251 = vmul.f32 %v1247, %v199
    %v1252 = vmul.f32 %v1250, %v199
    %v1253 = vadd.f32 %v1251, 1e-12
    %v1254 = vadd.f32 %v1252, 1e-12
    %v1255 = vrsqrt.pop %v1253
    %v1256 = vrsqrt.pop %v1254
    %v1257 = vmul.f32 %v1241, %v1255
    %v1258 = vmul.f32 %v1242, %v1256
    %v1259 = vlaneseq
    %v1260 = vshrl.u32 %v1259, 7
    %v1261 = vsub.s32 0, %v1260
    %v1262 = vrot.slane %v1231, %v1261
    %v1263 = vmul.f32 %v1257, %v1262
    %v1264 = vmul.f32 %v1258, %v1262
    %v1265 = vlaneseq
    %v1266 = vshrl.u32 %v1265, 7
    %v1267 = vsub.s32 0, %v1266
    %v1268 = vrot.slane %v1232, %v1267
    %v1269 = vadd.f32 %v1263, %v1268
    %v1270 = vadd.f32 %v1264, %v1268
    %v1271 = vld [vmem:[#allocation6 + $0x60] sm:$0xff]
    %v1272 = vld [vmem:[#allocation6 + $0x68] sm:$0xff]
    %v1273 = vld [vmem:[#allocation6 + $0x70] sm:$0xff]
    %v1274 = vld [vmem:[#allocation6 + $0x78] sm:$0xff]
    %v1275 = vld [vmem:[%s6 + $0xa] sm:$0x1]
    %v1276 = vlaneseq
    %v1277 = vshrl.u32 %v1276, 7
    %v1278 = vsub.s32 0, %v1277
    %v1279 = vrot.slane %v1275, %v1278
    %v1281 = vsel %vm192, %v1269, 0
    %v1284 = vsel %vm192, %v1270, 0
    %1286 = vmatprep.subr.mxu0 0.0
    %1287 = vmatpush1.msra.mxu0 %v1271
    %1288 = vmatprep.subr.mxu0 0.0
    %1289 = vmatpush1.msra.mxu0 %v1272
    %1290 = vmatprep.subr.mxu0 0.0
    %1291 = vmatpush1.msra.mxu0 %v1273
    %1292 = vmatprep.subr.mxu0 0.0
    %1293 = vmatpush1.msra.mxu0 %v1274
    %1294 = vmatprep.subr.mxu0 0.0
    %1295 = vmatpush1.msra.mxu0 0.0
    %1296 = vmatprep.subr.mxu0 0.0
    %1297 = vmatpush1.msra.mxu0 0.0
    %1298 = vmatprep.subr.mxu0 0.0
    %1299 = vmatpush1.msra.mxu0 0.0
    %1300 = vmatprep.subr.mxu0 0.0
    %1301 = vmatpush1.msra.mxu0 0.0
    %1302 = vmatprep.subr.mxu0 0.0
    %1303 = vmatpush1.msra.mxu0 0.0
    %1304 = vmatprep.subr.mxu0 0.0
    %1305 = vmatpush1.msra.mxu0 0.0
    %1306 = vmatprep.subr.mxu0 0.0
    %1307 = vmatpush1.msra.mxu0 0.0
    %1308 = vmatprep.subr.mxu0 0.0
    %1309 = vmatpush1.msra.mxu0 0.0
    %1310 = vmatprep.subr.mxu0 0.0
    %1311 = vmatpush1.msra.mxu0 0.0
    %1312 = vmatprep.subr.mxu0 0.0
    %1313 = vmatpush1.msra.mxu0 0.0
    %1314 = vmatprep.subr.mxu0 0.0
    %1315 = vmatpush1.msra.mxu0 0.0
    %1316 = vmatprep.subr.mxu0 0.0
    %1317 = vmatpush1.msra.mxu0 0.0
    %1318 = vmatprep.subr.mxu0 0.0
    %1319 = vmatpush1.msra.mxu0 0.0
    %1320 = vmatprep.subr.mxu0 0.0
    %1321 = vmatpush1.msra.mxu0 0.0
    %1322 = vmatprep.subr.mxu0 0.0
    %1323 = vmatpush1.msra.mxu0 0.0
    %1324 = vmatprep.subr.mxu0 0.0
    %1325 = vmatpush1.msra.mxu0 0.0
    %1326 = vmatprep.subr.mxu0 0.0
    %1327 = vmatpush1.msra.mxu0 0.0
    %1328 = vmatprep.subr.mxu0 0.0
    %1329 = vmatpush1.msra.mxu0 0.0
    %1330 = vmatprep.subr.mxu0 0.0
    %1331 = vmatpush1.msra.mxu0 0.0
    %1332 = vmatprep.subr.mxu0 0.0
    %1333 = vmatpush1.msra.mxu0 0.0
    %1334 = vmatprep.subr.mxu0 0.0
    %1335 = vmatpush1.msra.mxu0 0.0
    %1336 = vmatprep.subr.mxu0 0.0
    %1337 = vmatpush1.msra.mxu0 0.0
    %1338 = vmatprep.subr.mxu0 0.0
    %1339 = vmatpush1.msra.mxu0 0.0
    %1340 = vmatprep.subr.mxu0 0.0
    %1341 = vmatpush1.msra.mxu0 0.0
    %1342 = vmatprep.subr.mxu0 0.0
    %1343 = vmatpush1.msra.mxu0 0.0
    %1344 = vmatprep.subr.mxu0 0.0
    %1345 = vmatpush1.msra.mxu0 0.0
    %1346 = vmatprep.subr.mxu0 0.0
    %1347 = vmatpush1.msra.mxu0 0.0
    %1348 = vmatprep.subr.mxu0 0.0
    %1349 = vmatpush1.msra.mxu0 0.0
    %1350 = vmatprep.mubr.f32.mxu0 0.0
    %1351 = vmatmul.mubr.f32.gmra.mrb[0].mxu0 %v1281
    %v1352 = vpop.f32.mrb[0].mxu0
    %v1353 = vadd.f32 %v1279, %v1352
    %v1354 = vpop.f32.mrb[0].mxu0
    %1355 = vmatprep.mubr.f32.mxu0 0.0
    %1356 = vmatmul.mubr.f32.gmra.mrb[0].mxu0 %v1284
    %v1357 = vpop.f32.mrb[0].mxu0
    %v1358 = vadd.f32 %v1279, %v1357
    %v1359 = vpop.f32.mrb[0].mxu0
    %1360 = vdwg.mxu0
    %v1361 = vmax.f32 %v1353, 0.0
    %v1362 = vmax.f32 %v1358, 0.0
    %v1363 = vld [vmem:[%s6 + $0x10] sm:$0xff]
    %v1364 = vld [vmem:[%s6 + $0x18] sm:$0xff]
    %v1365 = vld [vmem:[%s6 + $0x20] sm:$0xff]
    %v1366 = vld [vmem:[%s6 + $0x28] sm:$0xff]
    %v1367 = vld [vmem:[%s6 + $0x30] sm:$0xff]
    %v1368 = vld [vmem:[%s6 + $0x38] sm:$0xff]
    %v1369 = vld [vmem:[%s6 + $0x40] sm:$0xff]
    %v1370 = vld [vmem:[%s6 + $0x48] sm:$0xff]
    %v1371 = vld [vmem:[%s6 + $0xb] sm:$0x1]
    %v1372 = vlaneseq
    %v1373 = vshrl.u32 %v1372, 7
    %v1374 = vsub.s32 0, %v1373
    %v1375 = vrot.slane %v1371, %v1374
    %v1377 = vsel %vm708, %v1361, 0
    %v1380 = vsel %vm708, %v1362, 0
    %1382 = vmatprep.subr.mxu0 0.0
    %1383 = vmatpush1.msra.mxu0 %v1363
    %1384 = vmatprep.subr.mxu0 0.0
    %1385 = vmatpush1.msra.mxu0 %v1364
    %1386 = vmatprep.subr.mxu0 0.0
    %1387 = vmatpush1.msra.mxu0 %v1365
    %1388 = vmatprep.subr.mxu0 0.0
    %1389 = vmatpush1.msra.mxu0 %v1366
    %1390 = vmatprep.subr.mxu0 0.0
    %1391 = vmatpush1.msra.mxu0 %v1367
    %1392 = vmatprep.subr.mxu0 0.0
    %1393 = vmatpush1.msra.mxu0 %v1368
    %1394 = vmatprep.subr.mxu0 0.0
    %1395 = vmatpush1.msra.mxu0 %v1369
    %1396 = vmatprep.subr.mxu0 0.0
    %1397 = vmatpush1.msra.mxu0 %v1370
    %1398 = vmatprep.subr.mxu0 0.0
    %1399 = vmatpush1.msra.mxu0 0.0
    %1400 = vmatprep.subr.mxu0 0.0
    %1401 = vmatpush1.msra.mxu0 0.0
    %1402 = vmatprep.subr.mxu0 0.0
    %1403 = vmatpush1.msra.mxu0 0.0
    %1404 = vmatprep.subr.mxu0 0.0
    %1405 = vmatpush1.msra.mxu0 0.0
    %1406 = vmatprep.subr.mxu0 0.0
    %1407 = vmatpush1.msra.mxu0 0.0
    %1408 = vmatprep.subr.mxu0 0.0
    %1409 = vmatpush1.msra.mxu0 0.0
    %1410 = vmatprep.subr.mxu0 0.0
    %1411 = vmatpush1.msra.mxu0 0.0
    %1412 = vmatprep.subr.mxu0 0.0
    %1413 = vmatpush1.msra.mxu0 0.0
    %1414 = vmatprep.subr.mxu0 0.0
    %1415 = vmatpush1.msra.mxu0 0.0
    %1416 = vmatprep.subr.mxu0 0.0
    %1417 = vmatpush1.msra.mxu0 0.0
    %1418 = vmatprep.subr.mxu0 0.0
    %1419 = vmatpush1.msra.mxu0 0.0
    %1420 = vmatprep.subr.mxu0 0.0
    %1421 = vmatpush1.msra.mxu0 0.0
    %1422 = vmatprep.subr.mxu0 0.0
    %1423 = vmatpush1.msra.mxu0 0.0
    %1424 = vmatprep.subr.mxu0 0.0
    %1425 = vmatpush1.msra.mxu0 0.0
    %1426 = vmatprep.subr.mxu0 0.0
    %1427 = vmatpush1.msra.mxu0 0.0
    %1428 = vmatprep.subr.mxu0 0.0
    %1429 = vmatpush1.msra.mxu0 0.0
    %1430 = vmatprep.subr.mxu0 0.0
    %1431 = vmatpush1.msra.mxu0 0.0
    %1432 = vmatprep.subr.mxu0 0.0
    %1433 = vmatpush1.msra.mxu0 0.0
    %1434 = vmatprep.subr.mxu0 0.0
    %1435 = vmatpush1.msra.mxu0 0.0
    %1436 = vmatprep.subr.mxu0 0.0
    %1437 = vmatpush1.msra.mxu0 0.0
    %1438 = vmatprep.subr.mxu0 0.0
    %1439 = vmatpush1.msra.mxu0 0.0
    %1440 = vmatprep.subr.mxu0 0.0
    %1441 = vmatpush1.msra.mxu0 0.0
    %1442 = vmatprep.subr.mxu0 0.0
    %1443 = vmatpush1.msra.mxu0 0.0
    %1444 = vmatprep.subr.mxu0 0.0
    %1445 = vmatpush1.msra.mxu0 0.0
    %1446 = vmatprep.mubr.f32.mxu0 0.0
    %1447 = vmatmul.mubr.f32.gmra.mrb[0].mxu0 %v1377
    %v1448 = vpop.f32.mrb[0].mxu0
    %v1449 = vadd.f32 %v1375, %v1448
    %v1450 = vpop.f32.mrb[0].mxu0
    %1451 = vmatprep.mubr.f32.mxu0 0.0
    %1452 = vmatmul.mubr.f32.gmra.mrb[0].mxu0 %v1380
    %v1453 = vpop.f32.mrb[0].mxu0
    %v1454 = vadd.f32 %v1375, %v1453
    %v1455 = vpop.f32.mrb[0].mxu0
    %1456 = vdwg.mxu0
    %1457 = vst [vmem:[%s7] sm:$0xff] %v1449
    %1458 = vst [vmem:[%s7 + $0x8] sm:$0xff] %v1454
    // Predicated region
    $region46: #{_lambda_.1} parent=1 // pred_check
      _
    $region47: #{_lambda_.1} parent=1 // pred_check_branch
      %1460 = sbr.rel (0) target = $region49
    $region48: #{_lambda_.1} parent=1 // pred_region
      _
    $region49: #{_lambda_.1} parent=1 // pred_fallthru
      _
    // Predicated region
    $region50: #{_lambda_.1} parent=1 // pred_check
      _
    $region51: #{_lambda_.1} parent=1 // pred_check_branch
      %1462 = sbr.rel (0) target = $region53
    $region52: #{_lambda_.1} parent=1 // pred_region
      _
    $region53: #{_lambda_.1} parent=1 // pred_fallthru
      _
    %1463 = vsyncpa [#allocation3], 1
    %1464 = vsyncpa [#allocation5], 1
    %1465 = vsyncpa [#allocation8], 1

</llo_original>
